<compile_context>
chip_gen: v5e
topology: v5e:2x2
jax: 0.10.0
libtpu: 0.0.40
codegen_flags: <defaults>
</compile_context>

<pallas_src>
import functools

import jax
import jax.numpy as jnp
from jax.experimental import pallas as pl
from jax.experimental.pallas import tpu as pltpu


# ----------------------------- device heuristics -----------------------------

def _device_kind():
    try:
        return jax.devices()[0].device_kind.lower()
    except Exception:
        return ""


def _is_v7(kind):
    return ("v7" in kind) or ("7x" in kind)


def _is_v5e(kind):
    return ("v5e" in kind) or ("v5 lite" in kind) or ("v5litepod" in kind)


def _default_matmul_dtype(kind):
    # bf16 halves weight DMA/VMEM everywhere; on v5e it adds pack ops on the
    # critical path with no MXU pass-count benefit at these shapes -> use f32.
    return jnp.float32 if _is_v5e(kind) else jnp.bfloat16


def _auto_batch_block(B, Lq, kind):
    # Fill the MXU M-dim: bb*Lq >= 128 (v5e) / 256 (v6e, v7x), capped by B.
    target_rows = 128 if _is_v5e(kind) else 256
    bb = min(B, max(1, -(-target_rows // Lq)))
    if _is_v7(kind) and B >= 2:
        # Need >= 2 grid steps so the "parallel" axis feeds both TensorCores.
        bb = min(bb, B // 2)
    bb = max(1, bb)
    while B % bb:
        bb -= 1
    return bb


def _vmem_limit_bytes(kind, bb, Lq, Lkv, D, FF, nhead, weight_bytes):
    n = nhead * Lq
    act_in = 2 * 2 * bb * (Lq + Lkv) * D * 4                 # double-buffered input blocks
    act_out = 2 * bb * Lq * D * 4                            # double-buffered output block
    weights = weight_bytes * (3 * D * D + D * D + 2 * D * FF)  # single-buffered weights
    small = 4 * (10 * max(D, FF) + 2 * n * D)                 # packed vectors + masks
    inter = 4 * (bb * (Lq + 2 * Lkv) * 3 * D                  # fused qkv result
                 + 2 * bb * n * D + bb * n * Lkv              # qh / of / scores
                 + bb * Lq * FF + 4 * bb * Lq * D)            # ffn hidden + misc
    need = act_in + act_out + weights + small + inter
    cap = (48 if _is_v7(kind) else 96) * 1024 * 1024
    return int(min(cap, max(32 * 1024 * 1024, 2 * need)))


# --------------------------------- kernel ------------------------------------

def _layernorm(x, gamma, beta, eps=1e-5):
    mean = jnp.mean(x, axis=-1, keepdims=True)
    var = jnp.mean((x - mean) ** 2, axis=-1, keepdims=True)
    return (x - mean) * jax.lax.rsqrt(var + eps) * gamma + beta


def csmhca_kernel(src_h_ref, src_l_ref, pos_h_ref, pos_l_ref,
                  wqkv_ref, wo_ref, w1_ref, w2_ref, vec_ref, mask_ref,
                  out_ref, *, nhead):
    f32 = jnp.float32
    cdt = wqkv_ref.dtype                      # matmul-operand dtype (bf16 or f32)

    bb, lq, d = src_h_ref.shape
    _, lkv, _ = src_l_ref.shape
    ff = w1_ref.shape[1]

    # Packed bias / LayerNorm vectors: rows 0..3 = bq,bk,bv,bo ; 4..7 = g1,be1,g2,be2 ;
    # 8 = b2 (width d) ; 9 = b1 (width ff).  Keep them 2D so they broadcast cleanly.
    def vec(i, w):
        return vec_ref[i:i + 1, :w].astype(f32)          # (1, w)

    bq, bk, bv, bo = vec(0, d), vec(1, d), vec(2, d), vec(3, d)
    g1, be1, g2, be2 = vec(4, d), vec(5, d), vec(6, d), vec(7, d)
    b2 = vec(8, d)
    b1 = vec(9, ff)

    # ---- Fused QKV projection: one MXU pass for all three projections --------
    q_in = (src_h_ref[...].astype(f32) + pos_h_ref[...].astype(f32)).reshape(bb * lq, d)
    k_in = (src_l_ref[...].astype(f32) + pos_l_ref[...].astype(f32)).reshape(bb * lkv, d)
    v_in = src_l_ref[...].astype(f32).reshape(bb * lkv, d)

    x_all = jnp.concatenate([q_in, k_in, v_in], axis=0)          # (bb*(lq+2*lkv), d)
    qkv = jnp.dot(x_all.astype(cdt), wqkv_ref[...],              # wqkv = [wq|wk|wv]
                  preferred_element_type=f32)                    # (rows, 3d)

    mq, mk = bb * lq, bb * lkv
    q = qkv[0:mq, 0:d] + bq                                      # (bb*lq,  d)
    k = qkv[mq:mq + mk, d:2 * d] + bk                            # (bb*lkv, d)
    v = qkv[mq + mk:mq + 2 * mk, 2 * d:3 * d] + bv               # (bb*lkv, d)

    # ---- Multi-head attention via per-head column masking (small-dh path) ----
    # mask_ref[0] = {1/sqrt(dh), 0} per-head column mask for q (scale folded in),
    # mask_ref[1] = {1, 0} output mask.  Precomputed on the host.
    n = nhead * lq
    qmask = mask_ref[0].astype(f32)                              # (n, d)
    omask = mask_ref[1].astype(f32)                              # (n, d)

    q3 = q.reshape(bb, lq, d)
    k3 = k.reshape(bb, lkv, d)
    v3 = v.reshape(bb, lkv, d)

    qh = jnp.broadcast_to(q3[:, None], (bb, nhead, lq, d)).reshape(bb, n, d)
    qh = qh * qmask[None]                                        # (bb, n, d)

    s = jnp.einsum('bnd,bkd->bnk', qh.astype(cdt), k3.astype(cdt),
                   preferred_element_type=f32)                   # (bb, n, lkv)
    s = s - jnp.max(s, axis=-1, keepdims=True)
    p = jnp.exp(s)
    p = p * pl.reciprocal(jnp.sum(p, axis=-1, keepdims=True), approx=True)

    of = jnp.einsum('bnk,bkd->bnd', p.astype(cdt), v3.astype(cdt),
                    preferred_element_type=f32)                  # (bb, n, d)
    of = of * omask[None]

    # Merge heads: sum the nhead sublane-aligned row blocks (columns disjoint).
    attn = of[:, 0:lq, :]
    for h in range(1, nhead):
        attn = attn + of[:, h * lq:(h + 1) * lq, :]              # (bb, lq, d)
    attn = attn.reshape(bb * lq, d)

    # Attention output projection.
    attn = jnp.dot(attn.astype(cdt), wo_ref[...], preferred_element_type=f32) + bo

    # ---- Post-norm path (normalize_before=False) ------------------------------
    x = _layernorm(attn, g1, be1)                                # f32

    h1 = jnp.dot(x.astype(cdt), w1_ref[...], preferred_element_type=f32) + b1
    h1 = jnp.maximum(h1, 0.0)
    ffn = jnp.dot(h1.astype(cdt), w2_ref[...], preferred_element_type=f32) + b2

    y = _layernorm(x + ffn, g2, be2)
    out_ref[...] = y.reshape(bb, lq, d).astype(out_ref.dtype)


# --------------------------------- wrapper -----------------------------------

def csmhca_forward(src_h, src_l, pos_h, pos_l, params, nhead, *,
                   batch_block=None, matmul_dtype=None):
    B, Lq, D = src_h.shape
    _, Lkv, _ = src_l.shape
    FF = params["w1"].shape[1]

    kind = _device_kind()
    if matmul_dtype is None:
        matmul_dtype = _default_matmul_dtype(kind)
    bb = _auto_batch_block(B, Lq, kind) if batch_block is None else batch_block

    assert B % bb == 0, "batch_block must divide batch"
    assert D % nhead == 0
    # In-kernel (B,L,D)<->(B*L,D) reshapes / row-stacking are layout no-ops when
    # L is a sublane multiple; the toy shapes (Lq=8, Lkv=16) satisfy this.
    assert Lq % 8 == 0 and Lkv % 8 == 0

    dh = D // nhead
    scale = 1.0 / (dh ** 0.5)
    n = nhead * Lq

    # Column-concatenated QKV weight for the fused projection; wo kept separate.
    wqkv = jnp.concatenate([params["wq"], params["wk"], params["wv"]],
                           axis=1).astype(matmul_dtype)          # (D, 3D)
    wo = params["wo"].astype(matmul_dtype)                       # (D, D)
    w1 = params["w1"].astype(matmul_dtype)                       # (D, FF)
    w2 = params["w2"].astype(matmul_dtype)                       # (FF, D)

    # Pack the ten tiny (1,D)/(1,FF) vectors (biases + LayerNorm affine) into a
    # single f32 operand -> one DMA instead of ten padded (8,128) blocks.
    VW = max(D, FF)

    def pad(v):
        return jnp.pad(v, ((0, 0), (0, VW - v.shape[1])))

    vecs = jnp.concatenate(
        [pad(params["bq"]), pad(params["bk"]), pad(params["bv"]), pad(params["bo"]),
         pad(params["g1"]), pad(params["be1"]), pad(params["g2"]), pad(params["be2"]),
         pad(params["b2"]), pad(params["b1"])], axis=0).astype(jnp.float32)  # (10, VW)

    # Per-head column masks, hoisted out of the kernel (depend only on shapes).
    lane_head = jnp.arange(D, dtype=jnp.int32)[None, :] // dh    # (1, D)
    row_head = jnp.arange(n, dtype=jnp.int32)[:, None] // Lq     # (n, 1)
    head_sel = lane_head == row_head                             # (n, D)
    masks = jnp.stack([jnp.where(head_sel, scale, 0.0).astype(jnp.float32),
                       head_sel.astype(jnp.float32)], axis=0)    # (2, n, D)

    vmem_limit = _vmem_limit_bytes(kind, bb, Lq, Lkv, D, FF, nhead,
                                   jnp.dtype(matmul_dtype).itemsize)

    def build(buffered_weights):
        def inv(shape):
            nd = len(shape)
            idx = (lambda i, _nd=nd: (0,) * _nd)
            if buffered_weights:
                try:
                    return pl.BlockSpec(shape, idx, pipeline_mode=pl.Buffered(1))
                except TypeError:
                    return pl.BlockSpec(shape, idx)
            return pl.BlockSpec(shape, idx)

        in_specs = [
            pl.BlockSpec((bb, Lq, D),  lambda i: (i, 0, 0)),     # src_h
            pl.BlockSpec((bb, Lkv, D), lambda i: (i, 0, 0)),     # src_l
            pl.BlockSpec((bb, Lq, D),  lambda i: (i, 0, 0)),     # pos_h
            pl.BlockSpec((bb, Lkv, D), lambda i: (i, 0, 0)),     # pos_l
            inv((D, 3 * D)),                                     # fused [wq|wk|wv]
            inv((D, D)),                                         # wo
            inv((D, FF)),                                        # linear1 weight
            inv((FF, D)),                                        # linear2 weight
            inv((10, VW)),                                       # packed biases / LN params
            inv((2, n, D)),                                      # head masks
        ]
        out_spec = pl.BlockSpec((bb, Lq, D), lambda i: (i, 0, 0))

        return pl.pallas_call(
            functools.partial(csmhca_kernel, nhead=nhead),
            out_shape=jax.ShapeDtypeStruct((B, Lq, D), jnp.float32),
            grid=(B // bb,),
            in_specs=in_specs,
            out_specs=out_spec,
            compiler_params=pltpu.CompilerParams(
                dimension_semantics=("parallel",),
                vmem_limit_bytes=vmem_limit,
            ),
        )

    args = (src_h, src_l, pos_h, pos_l, wqkv, wo, w1, w2, vecs, masks)
    try:
        return build(True)(*args)
    except Exception:
        # Fallback if pipeline_mode=pl.Buffered(1) is rejected by this jax/backend;
        # identical kernel, default (double-buffered) specs for invariant operands.
        return build(False)(*args)


# ------------------------------ pure-JAX reference ----------------------------

def reference(src_h, src_l, pos_h, pos_l, p, nhead, matmul_dtype=jnp.float32):
    """Pure-JAX reference mirroring the PyTorch forward (eval, post-norm).

    `matmul_dtype` controls the dtype of matmul operands only (accumulation is
    f32), mirroring the kernel's MXU-operand policy when set to bfloat16.
    """
    f32 = jnp.float32
    hp = jax.lax.Precision.HIGHEST

    def mm(eq, a, b):
        return jnp.einsum(eq, a.astype(matmul_dtype), b.astype(matmul_dtype),
                          preferred_element_type=f32, precision=hp)

    q_in = src_h + pos_h
    k_in = src_l + pos_l
    Q = mm("bld,de->ble", q_in, p["wq"]) + p["bq"][0]
    K = mm("bld,de->ble", k_in, p["wk"]) + p["bk"][0]
    V = mm("bld,de->ble", src_l, p["wv"]) + p["bv"][0]
    B, Lq, D = Q.shape
    Lkv = K.shape[1]
    dh = D // nhead
    Qh = Q.reshape(B, Lq, nhead, dh).transpose(0, 2, 1, 3)
    Kh = K.reshape(B, Lkv, nhead, dh).transpose(0, 2, 1, 3)
    Vh = V.reshape(B, Lkv, nhead, dh).transpose(0, 2, 1, 3)
    s = mm("bhqd,bhkd->bhqk", Qh * (1.0 / dh ** 0.5), Kh)
    a = jax.nn.softmax(s, axis=-1)
    o = mm("bhqk,bhkd->bhqd", a, Vh)
    o = o.transpose(0, 2, 1, 3).reshape(B, Lq, D)
    o = mm("bld,de->ble", o, p["wo"]) + p["bo"][0]

    def ln(x, g, b):
        m = x.mean(-1, keepdims=True)
        v = ((x - m) ** 2).mean(-1, keepdims=True)
        return (x - m) / jnp.sqrt(v + 1e-5) * g[0] + b[0]

    x = ln(o, p["g1"], p["be1"])
    h1 = jnp.maximum(mm("bld,df->blf", x, p["w1"]) + p["b1"][0], 0.0)
    f = mm("blf,fd->bld", h1, p["w2"]) + p["b2"][0]
    return ln(x + f, p["g2"], p["be2"])


def init_params(key, d_model, nhead, dim_ff):
    # Deterministic synthetic weights, stored as (in, out) so kernels do x @ W
    # (equivalent to PyTorch's x @ W.T with W of shape (out, in)).
    ks = jax.random.split(key, 12)
    sc_d = 1.0 / (d_model ** 0.5)
    sc_f = 1.0 / (dim_ff ** 0.5)
    return {
        "wq": jax.random.normal(ks[0], (d_model, d_model), jnp.float32) * sc_d,
        "bq": jax.random.normal(ks[1], (1, d_model), jnp.float32) * 0.02,
        "wk": jax.random.normal(ks[2], (d_model, d_model), jnp.float32) * sc_d,
        "bk": jax.random.normal(ks[3], (1, d_model), jnp.float32) * 0.02,
        "wv": jax.random.normal(ks[4], (d_model, d_model), jnp.float32) * sc_d,
        "bv": jax.random.normal(ks[5], (1, d_model), jnp.float32) * 0.02,
        "wo": jax.random.normal(ks[6], (d_model, d_model), jnp.float32) * sc_d,
        "bo": jax.random.normal(ks[7], (1, d_model), jnp.float32) * 0.02,
        "g1": jnp.ones((1, d_model), jnp.float32),
        "be1": jnp.zeros((1, d_model), jnp.float32),
        "g2": jnp.ones((1, d_model), jnp.float32),
        "be2": jnp.zeros((1, d_model), jnp.float32),
        "w1": jax.random.normal(ks[8], (d_model, dim_ff), jnp.float32) * sc_d,
        "b1": jax.random.normal(ks[9], (1, dim_ff), jnp.float32) * 0.02,
        "w2": jax.random.normal(ks[10], (dim_ff, d_model), jnp.float32) * sc_f,
        "b2": jax.random.normal(ks[11], (1, d_model), jnp.float32) * 0.02,
    }


if __name__ == "__main__":
    B, Lq, Lkv = 2, 8, 16
    D, H, FF = 32, 4, 64

    key = jax.random.PRNGKey(0)
    k_in, k_par = jax.random.split(key)
    ki = jax.random.split(k_in, 4)
    src_h = jax.random.normal(ki[0], (B, Lq, D), jnp.float32)
    src_l = jax.random.normal(ki[1], (B, Lkv, D), jnp.float32)
    pos_h = jax.random.normal(ki[2], (B, Lq, D), jnp.float32)
    pos_l = jax.random.normal(ki[3], (B, Lkv, D), jnp.float32)

    params = init_params(k_par, D, H, FF)

    kind = _device_kind()
    mdt = _default_matmul_dtype(kind)

    out = csmhca_forward(src_h, src_l, pos_h, pos_l, params, nhead=H,
                         matmul_dtype=mdt)
    out = jax.block_until_ready(out)

    # Tight check against a reference that mirrors the kernel's MXU-operand
    # dtype (accumulation in f32); loose sanity check against the pure-f32
    # reference (bf16 MXU operands shift values at the ~1e-2 level).
    ref_mirror = reference(src_h, src_l, pos_h, pos_l, params, H,
                           matmul_dtype=mdt)
    ref_f32 = reference(src_h, src_l, pos_h, pos_l, params, H,
                        matmul_dtype=jnp.float32)
    ref_mirror, ref_f32 = jax.block_until_ready((ref_mirror, ref_f32))

    assert out.shape == (B, Lq, D)
    assert bool(jnp.all(jnp.isfinite(out)))
    err_mirror = float(jnp.max(jnp.abs(out - ref_mirror)))
    err_f32 = float(jnp.max(jnp.abs(out - ref_f32)))
    assert bool(jnp.allclose(out, ref_mirror, atol=3e-2, rtol=3e-2)), (
        f"max abs err vs dtype-mirrored reference = {err_mirror}")
    assert err_f32 < 0.5, f"max abs err vs f32 reference = {err_f32}"

    print("KERNEL_OK")
</pallas_src>

<mosaic_0001>
module attributes {stable_mosaic.version = 11 : i64} {
  func.func @csmhca_kernel(%arg0: i32, %arg1: memref<2x8x32xf32, #tpu.memory_space<vmem>>, %arg2: memref<2x16x32xf32, #tpu.memory_space<vmem>>, %arg3: memref<2x8x32xf32, #tpu.memory_space<vmem>>, %arg4: memref<2x16x32xf32, #tpu.memory_space<vmem>>, %arg5: memref<32x96xbf16, #tpu.memory_space<vmem>>, %arg6: memref<32x32xbf16, #tpu.memory_space<vmem>>, %arg7: memref<32x64xbf16, #tpu.memory_space<vmem>>, %arg8: memref<64x32xbf16, #tpu.memory_space<vmem>>, %arg9: memref<10x64xf32, #tpu.memory_space<vmem>>, %arg10: memref<2x32x32xf32, #tpu.memory_space<vmem>>, %arg11: memref<2x8x32xf32, #tpu.memory_space<vmem>>) attributes {dimension_semantics = [#tpu.dimension_semantics<parallel>], iteration_bounds = array<i64: 1>, scalar_prefetch = 0 : i64, scratch_operands = 0 : i64, tpu.core_type = #tpu.core_type<tc>, window_params = [{transform_indices = @transform_0, window_bounds = array<i64: 2, 8, 32>}, {transform_indices = @transform_1, window_bounds = array<i64: 2, 16, 32>}, {transform_indices = @transform_2, window_bounds = array<i64: 2, 8, 32>}, {transform_indices = @transform_3, window_bounds = array<i64: 2, 16, 32>}, {pipeline_mode = #tpu.pipeline_mode<synchronous>, transform_indices = @transform_4, window_bounds = array<i64: 32, 96>}, {pipeline_mode = #tpu.pipeline_mode<synchronous>, transform_indices = @transform_5, window_bounds = array<i64: 32, 32>}, {pipeline_mode = #tpu.pipeline_mode<synchronous>, transform_indices = @transform_6, window_bounds = array<i64: 32, 64>}, {pipeline_mode = #tpu.pipeline_mode<synchronous>, transform_indices = @transform_7, window_bounds = array<i64: 64, 32>}, {pipeline_mode = #tpu.pipeline_mode<synchronous>, transform_indices = @transform_8, window_bounds = array<i64: 10, 64>}, {pipeline_mode = #tpu.pipeline_mode<synchronous>, transform_indices = @transform_9, window_bounds = array<i64: 2, 32, 32>}, {transform_indices = @transform_10, window_bounds = array<i64: 2, 8, 32>}]} {
    %c0 = arith.constant 0 : index
    %c0_0 = arith.constant 0 : index
    %0 = vector.load %arg9[%c0, %c0_0] : memref<10x64xf32, #tpu.memory_space<vmem>>, vector<1x32xf32>
    %c1 = arith.constant 1 : index
    %c0_1 = arith.constant 0 : index
    %1 = vector.load %arg9[%c1, %c0_1] : memref<10x64xf32, #tpu.memory_space<vmem>>, vector<1x32xf32>
    %c2 = arith.constant 2 : index
    %c0_2 = arith.constant 0 : index
    %2 = vector.load %arg9[%c2, %c0_2] : memref<10x64xf32, #tpu.memory_space<vmem>>, vector<1x32xf32>
    %c3 = arith.constant 3 : index
    %c0_3 = arith.constant 0 : index
    %3 = vector.load %arg9[%c3, %c0_3] : memref<10x64xf32, #tpu.memory_space<vmem>>, vector<1x32xf32>
    %c4 = arith.constant 4 : index
    %c0_4 = arith.constant 0 : index
    %4 = vector.load %arg9[%c4, %c0_4] : memref<10x64xf32, #tpu.memory_space<vmem>>, vector<1x32xf32>
    %c5 = arith.constant 5 : index
    %c0_5 = arith.constant 0 : index
    %5 = vector.load %arg9[%c5, %c0_5] : memref<10x64xf32, #tpu.memory_space<vmem>>, vector<1x32xf32>
    %c6 = arith.constant 6 : index
    %c0_6 = arith.constant 0 : index
    %6 = vector.load %arg9[%c6, %c0_6] : memref<10x64xf32, #tpu.memory_space<vmem>>, vector<1x32xf32>
    %c7 = arith.constant 7 : index
    %c0_7 = arith.constant 0 : index
    %7 = vector.load %arg9[%c7, %c0_7] : memref<10x64xf32, #tpu.memory_space<vmem>>, vector<1x32xf32>
    %c8 = arith.constant 8 : index
    %c0_8 = arith.constant 0 : index
    %8 = vector.load %arg9[%c8, %c0_8] : memref<10x64xf32, #tpu.memory_space<vmem>>, vector<1x32xf32>
    %c9 = arith.constant 9 : index
    %c0_9 = arith.constant 0 : index
    %9 = vector.load %arg9[%c9, %c0_9] : memref<10x64xf32, #tpu.memory_space<vmem>>, vector<1x64xf32>
    %c0_10 = arith.constant 0 : index
    %c0_11 = arith.constant 0 : index
    %c0_12 = arith.constant 0 : index
    %10 = vector.load %arg1[%c0_10, %c0_11, %c0_12] : memref<2x8x32xf32, #tpu.memory_space<vmem>>, vector<2x8x32xf32>
    %c0_13 = arith.constant 0 : index
    %c0_14 = arith.constant 0 : index
    %c0_15 = arith.constant 0 : index
    %11 = vector.load %arg3[%c0_13, %c0_14, %c0_15] : memref<2x8x32xf32, #tpu.memory_space<vmem>>, vector<2x8x32xf32>
    %12 = arith.addf %10, %11 : vector<2x8x32xf32>
    %13 = vector.shape_cast %12 : vector<2x8x32xf32> to vector<16x32xf32>
    %c0_16 = arith.constant 0 : index
    %c0_17 = arith.constant 0 : index
    %c0_18 = arith.constant 0 : index
    %14 = vector.load %arg2[%c0_16, %c0_17, %c0_18] : memref<2x16x32xf32, #tpu.memory_space<vmem>>, vector<2x16x32xf32>
    %c0_19 = arith.constant 0 : index
    %c0_20 = arith.constant 0 : index
    %c0_21 = arith.constant 0 : index
    %15 = vector.load %arg4[%c0_19, %c0_20, %c0_21] : memref<2x16x32xf32, #tpu.memory_space<vmem>>, vector<2x16x32xf32>
    %16 = arith.addf %14, %15 : vector<2x16x32xf32>
    %17 = vector.shape_cast %16 : vector<2x16x32xf32> to vector<32x32xf32>
    %c0_22 = arith.constant 0 : index
    %c0_23 = arith.constant 0 : index
    %c0_24 = arith.constant 0 : index
    %18 = vector.load %arg2[%c0_22, %c0_23, %c0_24] : memref<2x16x32xf32, #tpu.memory_space<vmem>>, vector<2x16x32xf32>
    %19 = vector.shape_cast %18 : vector<2x16x32xf32> to vector<32x32xf32>
    %20 = tpu.concatenate %13, %17, %19 in 0 : vector<16x32xf32>, vector<32x32xf32>, vector<32x32xf32> -> vector<80x32xf32>
    %21 = arith.truncf %20 : vector<80x32xf32> to vector<80x32xbf16>
    %c0_25 = arith.constant 0 : index
    %c0_26 = arith.constant 0 : index
    %22 = vector.load %arg5[%c0_25, %c0_26] : memref<32x96xbf16, #tpu.memory_space<vmem>>, vector<32x96xbf16>
    %cst = arith.constant dense<0.000000e+00> : vector<80x96xf32>
    %23 = tpu.matmul %21, %22, %cst {dimension_numbers = #tpu.dot_dimension_numbers<[1], [0], [0], [1], [0, 0, 1, 1], [], []>} : vector<80x32xbf16>, vector<32x96xbf16>, vector<80x96xf32> -> vector<80x96xf32>
    %24 = vector.extract_strided_slice %23 {offsets = [0, 0], sizes = [16, 32], strides = [1, 1]} : vector<80x96xf32> to vector<16x32xf32>
    %25 = vector.broadcast %0 : vector<1x32xf32> to vector<16x32xf32>
    %26 = arith.addf %24, %25 : vector<16x32xf32>
    %27 = vector.extract_strided_slice %23 {offsets = [16, 32], sizes = [32, 32], strides = [1, 1]} : vector<80x96xf32> to vector<32x32xf32>
    %28 = vector.broadcast %1 : vector<1x32xf32> to vector<32x32xf32>
    %29 = arith.addf %27, %28 : vector<32x32xf32>
    %30 = vector.extract_strided_slice %23 {offsets = [48, 64], sizes = [32, 32], strides = [1, 1]} : vector<80x96xf32> to vector<32x32xf32>
    %31 = vector.broadcast %2 : vector<1x32xf32> to vector<32x32xf32>
    %32 = arith.addf %30, %31 : vector<32x32xf32>
    %c0_27 = arith.constant 0 : index
    %c0_28 = arith.constant 0 : index
    %c0_29 = arith.constant 0 : index
    %33 = vector.load %arg10[%c0_27, %c0_28, %c0_29] : memref<2x32x32xf32, #tpu.memory_space<vmem>>, vector<1x32x32xf32>
    %34 = vector.shape_cast %33 : vector<1x32x32xf32> to vector<32x32xf32>
    %c1_30 = arith.constant 1 : index
    %c0_31 = arith.constant 0 : index
    %c0_32 = arith.constant 0 : index
    %35 = vector.load %arg10[%c1_30, %c0_31, %c0_32] : memref<2x32x32xf32, #tpu.memory_space<vmem>>, vector<1x32x32xf32>
    %36 = vector.shape_cast %35 : vector<1x32x32xf32> to vector<32x32xf32>
    %37 = vector.shape_cast %26 : vector<16x32xf32> to vector<2x8x32xf32>
    %38 = vector.shape_cast %29 : vector<32x32xf32> to vector<2x16x32xf32>
    %39 = vector.shape_cast %32 : vector<32x32xf32> to vector<2x16x32xf32>
    %40 = vector.shape_cast %37 : vector<2x8x32xf32> to vector<2x1x8x32xf32>
    %41 = vector.shape_cast %40 : vector<2x1x8x32xf32> to vector<2x1x8x32xf32>
    %42 = vector.broadcast %41 : vector<2x1x8x32xf32> to vector<2x4x8x32xf32>
    %43 = vector.shape_cast %42 : vector<2x4x8x32xf32> to vector<2x32x32xf32>
    %44 = vector.shape_cast %34 : vector<32x32xf32> to vector<1x32x32xf32>
    %45 = vector.broadcast %44 : vector<1x32x32xf32> to vector<2x32x32xf32>
    %46 = arith.mulf %43, %45 : vector<2x32x32xf32>
    %47 = arith.truncf %46 : vector<2x32x32xf32> to vector<2x32x32xbf16>
    %48 = arith.truncf %38 : vector<2x16x32xf32> to vector<2x16x32xbf16>
    "tpu.trace_start"() <{level = 10 : i32, message = "bnd,bkd->bnk"}> : () -> ()
    %cst_33 = arith.constant dense<0.000000e+00> : vector<2x32x16xf32>
    %49 = tpu.matmul %47, %48, %cst_33 {dimension_numbers = #tpu.dot_dimension_numbers<[2], [2], [1], [1], [0, 0, 0, 1, 1, 1], [0], [0]>} : vector<2x32x32xbf16>, vector<2x16x32xbf16>, vector<2x32x16xf32> -> vector<2x32x16xf32>
    "tpu.trace_stop"() : () -> ()
    %cst_34 = arith.constant dense<0xFF800000> : vector<2x32xf32>
    %50 = vector.multi_reduction <maximumf>, %49, %cst_34 [2] : vector<2x32x16xf32> to vector<2x32xf32>
    %51 = vector.shape_cast %50 : vector<2x32xf32> to vector<2x32x1xf32>
    %52 = vector.broadcast %51 : vector<2x32x1xf32> to vector<2x32x16xf32>
    %53 = arith.subf %49, %52 : vector<2x32x16xf32>
    %54 = math.exp %53 : vector<2x32x16xf32>
    %cst_35 = arith.constant dense<0.000000e+00> : vector<2x32xf32>
    %55 = vector.multi_reduction <add>, %54, %cst_35 [2] : vector<2x32x16xf32> to vector<2x32xf32>
    %56 = vector.shape_cast %55 : vector<2x32xf32> to vector<2x32x1xf32>
    %57 = tpu.reciprocal %56 {approx = true} : vector<2x32x1xf32> -> vector<2x32x1xf32>
    %58 = vector.broadcast %57 : vector<2x32x1xf32> to vector<2x32x16xf32>
    %59 = arith.mulf %54, %58 : vector<2x32x16xf32>
    %60 = arith.truncf %59 : vector<2x32x16xf32> to vector<2x32x16xbf16>
    %61 = arith.truncf %39 : vector<2x16x32xf32> to vector<2x16x32xbf16>
    "tpu.trace_start"() <{level = 10 : i32, message = "bnk,bkd->bnd"}> : () -> ()
    %cst_36 = arith.constant dense<0.000000e+00> : vector<2x32x32xf32>
    %62 = tpu.matmul %60, %61, %cst_36 {dimension_numbers = #tpu.dot_dimension_numbers<[2], [1], [1], [2], [0, 0, 0, 1, 1, 2], [0], [0]>} : vector<2x32x16xbf16>, vector<2x16x32xbf16>, vector<2x32x32xf32> -> vector<2x32x32xf32>
    "tpu.trace_stop"() : () -> ()
    %63 = vector.shape_cast %36 : vector<32x32xf32> to vector<1x32x32xf32>
    %64 = vector.broadcast %63 : vector<1x32x32xf32> to vector<2x32x32xf32>
    %65 = arith.mulf %62, %64 : vector<2x32x32xf32>
    %66 = vector.extract_strided_slice %65 {offsets = [0, 0, 0], sizes = [2, 8, 32], strides = [1, 1, 1]} : vector<2x32x32xf32> to vector<2x8x32xf32>
    %67 = vector.extract_strided_slice %65 {offsets = [0, 8, 0], sizes = [2, 8, 32], strides = [1, 1, 1]} : vector<2x32x32xf32> to vector<2x8x32xf32>
    %68 = arith.addf %66, %67 : vector<2x8x32xf32>
    %69 = vector.extract_strided_slice %65 {offsets = [0, 16, 0], sizes = [2, 8, 32], strides = [1, 1, 1]} : vector<2x32x32xf32> to vector<2x8x32xf32>
    %70 = arith.addf %68, %69 : vector<2x8x32xf32>
    %71 = vector.extract_strided_slice %65 {offsets = [0, 24, 0], sizes = [2, 8, 32], strides = [1, 1, 1]} : vector<2x32x32xf32> to vector<2x8x32xf32>
    %72 = arith.addf %70, %71 : vector<2x8x32xf32>
    %73 = vector.shape_cast %72 : vector<2x8x32xf32> to vector<16x32xf32>
    %74 = arith.truncf %73 : vector<16x32xf32> to vector<16x32xbf16>
    %c0_37 = arith.constant 0 : index
    %c0_38 = arith.constant 0 : index
    %75 = vector.load %arg6[%c0_37, %c0_38] : memref<32x32xbf16, #tpu.memory_space<vmem>>, vector<32x32xbf16>
    %cst_39 = arith.constant dense<0.000000e+00> : vector<16x32xf32>
    %76 = tpu.matmul %74, %75, %cst_39 {dimension_numbers = #tpu.dot_dimension_numbers<[1], [0], [0], [1], [0, 0, 1, 1], [], []>} : vector<16x32xbf16>, vector<32x32xbf16>, vector<16x32xf32> -> vector<16x32xf32>
    %77 = vector.broadcast %3 : vector<1x32xf32> to vector<16x32xf32>
    %78 = arith.addf %76, %77 : vector<16x32xf32>
    %cst_40 = arith.constant dense<0.000000e+00> : vector<16xf32>
    %79 = vector.multi_reduction <add>, %78, %cst_40 [1] : vector<16x32xf32> to vector<16xf32>
    %80 = vector.shape_cast %79 : vector<16xf32> to vector<16x1xf32>
    %cst_41 = arith.constant 3.200000e+01 : f32
    %81 = vector.broadcast %cst_41 : f32 to vector<16x1xf32>
    %82 = arith.divf %80, %81 : vector<16x1xf32>
    %83 = vector.broadcast %82 : vector<16x1xf32> to vector<16x32xf32>
    %84 = arith.subf %78, %83 : vector<16x32xf32>
    %85 = arith.mulf %84, %84 : vector<16x32xf32>
    %cst_42 = arith.constant dense<0.000000e+00> : vector<16xf32>
    %86 = vector.multi_reduction <add>, %85, %cst_42 [1] : vector<16x32xf32> to vector<16xf32>
    %87 = vector.shape_cast %86 : vector<16xf32> to vector<16x1xf32>
    %cst_43 = arith.constant 3.200000e+01 : f32
    %88 = vector.broadcast %cst_43 : f32 to vector<16x1xf32>
    %89 = arith.divf %87, %88 : vector<16x1xf32>
    %90 = vector.broadcast %82 : vector<16x1xf32> to vector<16x32xf32>
    %91 = arith.subf %78, %90 : vector<16x32xf32>
    %cst_44 = arith.constant 9.99999974E-6 : f32
    %92 = vector.broadcast %cst_44 : f32 to vector<16x1xf32>
    %93 = arith.addf %89, %92 : vector<16x1xf32>
    %94 = math.rsqrt %93 : vector<16x1xf32>
    %95 = vector.broadcast %94 : vector<16x1xf32> to vector<16x32xf32>
    %96 = arith.mulf %91, %95 : vector<16x32xf32>
    %97 = vector.broadcast %4 : vector<1x32xf32> to vector<16x32xf32>
    %98 = arith.mulf %96, %97 : vector<16x32xf32>
    %99 = vector.broadcast %5 : vector<1x32xf32> to vector<16x32xf32>
    %100 = arith.addf %98, %99 : vector<16x32xf32>
    %101 = arith.truncf %100 : vector<16x32xf32> to vector<16x32xbf16>
    %c0_45 = arith.constant 0 : index
    %c0_46 = arith.constant 0 : index
    %102 = vector.load %arg7[%c0_45, %c0_46] : memref<32x64xbf16, #tpu.memory_space<vmem>>, vector<32x64xbf16>
    %cst_47 = arith.constant dense<0.000000e+00> : vector<16x64xf32>
    %103 = tpu.matmul %101, %102, %cst_47 {dimension_numbers = #tpu.dot_dimension_numbers<[1], [0], [0], [1], [0, 0, 1, 1], [], []>} : vector<16x32xbf16>, vector<32x64xbf16>, vector<16x64xf32> -> vector<16x64xf32>
    %104 = vector.broadcast %9 : vector<1x64xf32> to vector<16x64xf32>
    %105 = arith.addf %103, %104 : vector<16x64xf32>
    %cst_48 = arith.constant 0.000000e+00 : f32
    %106 = vector.broadcast %cst_48 : f32 to vector<16x64xf32>
    %107 = arith.maximumf %105, %106 : vector<16x64xf32>
    %108 = arith.truncf %107 : vector<16x64xf32> to vector<16x64xbf16>
    %c0_49 = arith.constant 0 : index
    %c0_50 = arith.constant 0 : index
    %109 = vector.load %arg8[%c0_49, %c0_50] : memref<64x32xbf16, #tpu.memory_space<vmem>>, vector<64x32xbf16>
    %cst_51 = arith.constant dense<0.000000e+00> : vector<16x32xf32>
    %110 = tpu.matmul %108, %109, %cst_51 {dimension_numbers = #tpu.dot_dimension_numbers<[1], [0], [0], [1], [0, 0, 1, 1], [], []>} : vector<16x64xbf16>, vector<64x32xbf16>, vector<16x32xf32> -> vector<16x32xf32>
    %111 = vector.broadcast %8 : vector<1x32xf32> to vector<16x32xf32>
    %112 = arith.addf %110, %111 : vector<16x32xf32>
    %113 = arith.addf %100, %112 : vector<16x32xf32>
    %cst_52 = arith.constant dense<0.000000e+00> : vector<16xf32>
    %114 = vector.multi_reduction <add>, %113, %cst_52 [1] : vector<16x32xf32> to vector<16xf32>
    %115 = vector.shape_cast %114 : vector<16xf32> to vector<16x1xf32>
    %cst_53 = arith.constant 3.200000e+01 : f32
    %116 = vector.broadcast %cst_53 : f32 to vector<16x1xf32>
    %117 = arith.divf %115, %116 : vector<16x1xf32>
    %118 = vector.broadcast %117 : vector<16x1xf32> to vector<16x32xf32>
    %119 = arith.subf %113, %118 : vector<16x32xf32>
    %120 = arith.mulf %119, %119 : vector<16x32xf32>
    %cst_54 = arith.constant dense<0.000000e+00> : vector<16xf32>
    %121 = vector.multi_reduction <add>, %120, %cst_54 [1] : vector<16x32xf32> to vector<16xf32>
    %122 = vector.shape_cast %121 : vector<16xf32> to vector<16x1xf32>
    %cst_55 = arith.constant 3.200000e+01 : f32
    %123 = vector.broadcast %cst_55 : f32 to vector<16x1xf32>
    %124 = arith.divf %122, %123 : vector<16x1xf32>
    %125 = vector.broadcast %117 : vector<16x1xf32> to vector<16x32xf32>
    %126 = arith.subf %113, %125 : vector<16x32xf32>
    %cst_56 = arith.constant 9.99999974E-6 : f32
    %127 = vector.broadcast %cst_56 : f32 to vector<16x1xf32>
    %128 = arith.addf %124, %127 : vector<16x1xf32>
    %129 = math.rsqrt %128 : vector<16x1xf32>
    %130 = vector.broadcast %129 : vector<16x1xf32> to vector<16x32xf32>
    %131 = arith.mulf %126, %130 : vector<16x32xf32>
    %132 = vector.broadcast %6 : vector<1x32xf32> to vector<16x32xf32>
    %133 = arith.mulf %131, %132 : vector<16x32xf32>
    %134 = vector.broadcast %7 : vector<1x32xf32> to vector<16x32xf32>
    %135 = arith.addf %133, %134 : vector<16x32xf32>
    %136 = vector.shape_cast %135 : vector<16x32xf32> to vector<2x8x32xf32>
    %c0_57 = arith.constant 0 : index
    %c0_58 = arith.constant 0 : index
    %c0_59 = arith.constant 0 : index
    %137 = vector.load %arg11[%c0_57, %c0_58, %c0_59] : memref<2x8x32xf32, #tpu.memory_space<vmem>>, vector<2x8x32xf32>
    tpu.vector_store %arg11[%c0_57, %c0_58, %c0_59], %136 {strides = array<i32>} : memref<2x8x32xf32, #tpu.memory_space<vmem>>, vector<2x8x32xf32>,
    return
  }
  func.func @transform_0(%arg0: i32) -> (i32, i32, i32) {
    %c0_i32 = arith.constant 0 : i32
    %c0_i32_0 = arith.constant 0 : i32
    %c0_i32_1 = arith.constant 0 : i32
    return %arg0, %c0_i32, %c0_i32_0 : i32, i32, i32
  }
  func.func @transform_1(%arg0: i32) -> (i32, i32, i32) {
    %c0_i32 = arith.constant 0 : i32
    %c0_i32_0 = arith.constant 0 : i32
    %c0_i32_1 = arith.constant 0 : i32
    return %arg0, %c0_i32, %c0_i32_0 : i32, i32, i32
  }
  func.func @transform_2(%arg0: i32) -> (i32, i32, i32) {
    %c0_i32 = arith.constant 0 : i32
    %c0_i32_0 = arith.constant 0 : i32
    %c0_i32_1 = arith.constant 0 : i32
    return %arg0, %c0_i32, %c0_i32_0 : i32, i32, i32
  }
  func.func @transform_3(%arg0: i32) -> (i32, i32, i32) {
    %c0_i32 = arith.constant 0 : i32
    %c0_i32_0 = arith.constant 0 : i32
    %c0_i32_1 = arith.constant 0 : i32
    return %arg0, %c0_i32, %c0_i32_0 : i32, i32, i32
  }
  func.func @transform_4(%arg0: i32) -> (i32, i32) {
    %c0_i32 = arith.constant 0 : i32
    %c0_i32_0 = arith.constant 0 : i32
    %c0_i32_1 = arith.constant 0 : i32
    return %c0_i32, %c0_i32_0 : i32, i32
  }
  func.func @transform_5(%arg0: i32) -> (i32, i32) {
    %c0_i32 = arith.constant 0 : i32
    %c0_i32_0 = arith.constant 0 : i32
    %c0_i32_1 = arith.constant 0 : i32
    return %c0_i32, %c0_i32_0 : i32, i32
  }
  func.func @transform_6(%arg0: i32) -> (i32, i32) {
    %c0_i32 = arith.constant 0 : i32
    %c0_i32_0 = arith.constant 0 : i32
    %c0_i32_1 = arith.constant 0 : i32
    return %c0_i32, %c0_i32_0 : i32, i32
  }
  func.func @transform_7(%arg0: i32) -> (i32, i32) {
    %c0_i32 = arith.constant 0 : i32
    %c0_i32_0 = arith.constant 0 : i32
    %c0_i32_1 = arith.constant 0 : i32
    return %c0_i32, %c0_i32_0 : i32, i32
  }
  func.func @transform_8(%arg0: i32) -> (i32, i32) {
    %c0_i32 = arith.constant 0 : i32
    %c0_i32_0 = arith.constant 0 : i32
    %c0_i32_1 = arith.constant 0 : i32
    return %c0_i32, %c0_i32_0 : i32, i32
  }
  func.func @transform_9(%arg0: i32) -> (i32, i32, i32) {
    %c0_i32 = arith.constant 0 : i32
    %c0_i32_0 = arith.constant 0 : i32
    %c0_i32_1 = arith.constant 0 : i32
    %c0_i32_2 = arith.constant 0 : i32
    return %c0_i32, %c0_i32_0, %c0_i32_1 : i32, i32, i32
  }
  func.func @transform_10(%arg0: i32) -> (i32, i32, i32) {
    %c0_i32 = arith.constant 0 : i32
    %c0_i32_0 = arith.constant 0 : i32
    %c0_i32_1 = arith.constant 0 : i32
    return %arg0, %c0_i32, %c0_i32_0 : i32, i32, i32
  }
}

module attributes {stable_mosaic.version = 11 : i64} {
  func.func @csmhca_kernel(%arg0: i32, %arg1: memref<2x8x32xf32, #tpu.memory_space<vmem>>, %arg2: memref<2x16x32xf32, #tpu.memory_space<vmem>>, %arg3: memref<2x8x32xf32, #tpu.memory_space<vmem>>, %arg4: memref<2x16x32xf32, #tpu.memory_space<vmem>>, %arg5: memref<32x96xbf16, #tpu.memory_space<vmem>>, %arg6: memref<32x32xbf16, #tpu.memory_space<vmem>>, %arg7: memref<32x64xbf16, #tpu.memory_space<vmem>>, %arg8: memref<64x32xbf16, #tpu.memory_space<vmem>>, %arg9: memref<10x64xf32, #tpu.memory_space<vmem>>, %arg10: memref<2x32x32xf32, #tpu.memory_space<vmem>>, %arg11: memref<2x8x32xf32, #tpu.memory_space<vmem>>) attributes {dimension_semantics = [#tpu.dimension_semantics<parallel>], iteration_bounds = array<i64: 1>, scalar_prefetch = 0 : i64, scratch_operands = 0 : i64, tpu.core_type = #tpu.core_type<tc>, window_params = [{transform_indices = @transform_0, window_bounds = array<i64: 2, 8, 32>}, {transform_indices = @transform_1, window_bounds = array<i64: 2, 16, 32>}, {transform_indices = @transform_2, window_bounds = array<i64: 2, 8, 32>}, {transform_indices = @transform_3, window_bounds = array<i64: 2, 16, 32>}, {pipeline_mode = #tpu.pipeline_mode<synchronous>, transform_indices = @transform_4, window_bounds = array<i64: 32, 96>}, {pipeline_mode = #tpu.pipeline_mode<synchronous>, transform_indices = @transform_5, window_bounds = array<i64: 32, 32>}, {pipeline_mode = #tpu.pipeline_mode<synchronous>, transform_indices = @transform_6, window_bounds = array<i64: 32, 64>}, {pipeline_mode = #tpu.pipeline_mode<synchronous>, transform_indices = @transform_7, window_bounds = array<i64: 64, 32>}, {pipeline_mode = #tpu.pipeline_mode<synchronous>, transform_indices = @transform_8, window_bounds = array<i64: 10, 64>}, {pipeline_mode = #tpu.pipeline_mode<synchronous>, transform_indices = @transform_9, window_bounds = array<i64: 2, 32, 32>}, {transform_indices = @transform_10, window_bounds = array<i64: 2, 8, 32>}]} {
    %c0 = arith.constant 0 : index
    %c0_0 = arith.constant 0 : index
    %0 = vector.load %arg9[%c0, %c0_0] : memref<10x64xf32, #tpu.memory_space<vmem>>, vector<1x32xf32>
    %c1 = arith.constant 1 : index
    %c0_1 = arith.constant 0 : index
    %1 = vector.load %arg9[%c1, %c0_1] : memref<10x64xf32, #tpu.memory_space<vmem>>, vector<1x32xf32>
    %c2 = arith.constant 2 : index
    %c0_2 = arith.constant 0 : index
    %2 = vector.load %arg9[%c2, %c0_2] : memref<10x64xf32, #tpu.memory_space<vmem>>, vector<1x32xf32>
    %c3 = arith.constant 3 : index
    %c0_3 = arith.constant 0 : index
    %3 = vector.load %arg9[%c3, %c0_3] : memref<10x64xf32, #tpu.memory_space<vmem>>, vector<1x32xf32>
    %c4 = arith.constant 4 : index
    %c0_4 = arith.constant 0 : index
    %4 = vector.load %arg9[%c4, %c0_4] : memref<10x64xf32, #tpu.memory_space<vmem>>, vector<1x32xf32>
    %c5 = arith.constant 5 : index
    %c0_5 = arith.constant 0 : index
    %5 = vector.load %arg9[%c5, %c0_5] : memref<10x64xf32, #tpu.memory_space<vmem>>, vector<1x32xf32>
    %c6 = arith.constant 6 : index
    %c0_6 = arith.constant 0 : index
    %6 = vector.load %arg9[%c6, %c0_6] : memref<10x64xf32, #tpu.memory_space<vmem>>, vector<1x32xf32>
    %c7 = arith.constant 7 : index
    %c0_7 = arith.constant 0 : index
    %7 = vector.load %arg9[%c7, %c0_7] : memref<10x64xf32, #tpu.memory_space<vmem>>, vector<1x32xf32>
    %c8 = arith.constant 8 : index
    %c0_8 = arith.constant 0 : index
    %8 = vector.load %arg9[%c8, %c0_8] : memref<10x64xf32, #tpu.memory_space<vmem>>, vector<1x32xf32>
    %c9 = arith.constant 9 : index
    %c0_9 = arith.constant 0 : index
    %9 = vector.load %arg9[%c9, %c0_9] : memref<10x64xf32, #tpu.memory_space<vmem>>, vector<1x64xf32>
    %c0_10 = arith.constant 0 : index
    %c0_11 = arith.constant 0 : index
    %c0_12 = arith.constant 0 : index
    %10 = vector.load %arg1[%c0_10, %c0_11, %c0_12] : memref<2x8x32xf32, #tpu.memory_space<vmem>>, vector<2x8x32xf32>
    %c0_13 = arith.constant 0 : index
    %c0_14 = arith.constant 0 : index
    %c0_15 = arith.constant 0 : index
    %11 = vector.load %arg3[%c0_13, %c0_14, %c0_15] : memref<2x8x32xf32, #tpu.memory_space<vmem>>, vector<2x8x32xf32>
    %12 = arith.addf %10, %11 : vector<2x8x32xf32>
    %13 = vector.shape_cast %12 : vector<2x8x32xf32> to vector<16x32xf32>
    %c0_16 = arith.constant 0 : index
    %c0_17 = arith.constant 0 : index
    %c0_18 = arith.constant 0 : index
    %14 = vector.load %arg2[%c0_16, %c0_17, %c0_18] : memref<2x16x32xf32, #tpu.memory_space<vmem>>, vector<2x16x32xf32>
    %c0_19 = arith.constant 0 : index
    %c0_20 = arith.constant 0 : index
    %c0_21 = arith.constant 0 : index
    %15 = vector.load %arg4[%c0_19, %c0_20, %c0_21] : memref<2x16x32xf32, #tpu.memory_space<vmem>>, vector<2x16x32xf32>
    %16 = arith.addf %14, %15 : vector<2x16x32xf32>
    %17 = vector.shape_cast %16 : vector<2x16x32xf32> to vector<32x32xf32>
    %c0_22 = arith.constant 0 : index
    %c0_23 = arith.constant 0 : index
    %c0_24 = arith.constant 0 : index
    %18 = vector.load %arg2[%c0_22, %c0_23, %c0_24] : memref<2x16x32xf32, #tpu.memory_space<vmem>>, vector<2x16x32xf32>
    %19 = vector.shape_cast %18 : vector<2x16x32xf32> to vector<32x32xf32>
    %20 = tpu.concatenate %13, %17, %19 in 0 : vector<16x32xf32>, vector<32x32xf32>, vector<32x32xf32> -> vector<80x32xf32>
    %21 = arith.truncf %20 : vector<80x32xf32> to vector<80x32xbf16>
    %c0_25 = arith.constant 0 : index
    %c0_26 = arith.constant 0 : index
    %22 = vector.load %arg5[%c0_25, %c0_26] : memref<32x96xbf16, #tpu.memory_space<vmem>>, vector<32x96xbf16>
    %cst = arith.constant dense<0.000000e+00> : vector<80x96xf32>
    %23 = tpu.matmul %21, %22, %cst {dimension_numbers = #tpu.dot_dimension_numbers<[1], [0], [0], [1], [0, 0, 1, 1], [], []>} : vector<80x32xbf16>, vector<32x96xbf16>, vector<80x96xf32> -> vector<80x96xf32>
    %24 = vector.extract_strided_slice %23 {offsets = [0, 0], sizes = [16, 32], strides = [1, 1]} : vector<80x96xf32> to vector<16x32xf32>
    %25 = vector.broadcast %0 : vector<1x32xf32> to vector<16x32xf32>
    %26 = arith.addf %24, %25 : vector<16x32xf32>
    %27 = vector.extract_strided_slice %23 {offsets = [16, 32], sizes = [32, 32], strides = [1, 1]} : vector<80x96xf32> to vector<32x32xf32>
    %28 = vector.broadcast %1 : vector<1x32xf32> to vector<32x32xf32>
    %29 = arith.addf %27, %28 : vector<32x32xf32>
    %30 = vector.extract_strided_slice %23 {offsets = [48, 64], sizes = [32, 32], strides = [1, 1]} : vector<80x96xf32> to vector<32x32xf32>
    %31 = vector.broadcast %2 : vector<1x32xf32> to vector<32x32xf32>
    %32 = arith.addf %30, %31 : vector<32x32xf32>
    %c0_27 = arith.constant 0 : index
    %c0_28 = arith.constant 0 : index
    %c0_29 = arith.constant 0 : index
    %33 = vector.load %arg10[%c0_27, %c0_28, %c0_29] : memref<2x32x32xf32, #tpu.memory_space<vmem>>, vector<1x32x32xf32>
    %34 = vector.shape_cast %33 : vector<1x32x32xf32> to vector<32x32xf32>
    %c1_30 = arith.constant 1 : index
    %c0_31 = arith.constant 0 : index
    %c0_32 = arith.constant 0 : index
    %35 = vector.load %arg10[%c1_30, %c0_31, %c0_32] : memref<2x32x32xf32, #tpu.memory_space<vmem>>, vector<1x32x32xf32>
    %36 = vector.shape_cast %35 : vector<1x32x32xf32> to vector<32x32xf32>
    %37 = vector.shape_cast %26 : vector<16x32xf32> to vector<2x8x32xf32>
    %38 = vector.shape_cast %29 : vector<32x32xf32> to vector<2x16x32xf32>
    %39 = vector.shape_cast %32 : vector<32x32xf32> to vector<2x16x32xf32>
    %40 = vector.shape_cast %37 : vector<2x8x32xf32> to vector<2x1x8x32xf32>
    %41 = vector.shape_cast %40 : vector<2x1x8x32xf32> to vector<2x1x8x32xf32>
    %42 = vector.broadcast %41 : vector<2x1x8x32xf32> to vector<2x4x8x32xf32>
    %43 = vector.shape_cast %42 : vector<2x4x8x32xf32> to vector<2x32x32xf32>
    %44 = vector.shape_cast %34 : vector<32x32xf32> to vector<1x32x32xf32>
    %45 = vector.broadcast %44 : vector<1x32x32xf32> to vector<2x32x32xf32>
    %46 = arith.mulf %43, %45 : vector<2x32x32xf32>
    %47 = arith.truncf %46 : vector<2x32x32xf32> to vector<2x32x32xbf16>
    %48 = arith.truncf %38 : vector<2x16x32xf32> to vector<2x16x32xbf16>
    "tpu.trace_start"() <{level = 10 : i32, message = "bnd,bkd->bnk"}> : () -> ()
    %cst_33 = arith.constant dense<0.000000e+00> : vector<2x32x16xf32>
    %49 = tpu.matmul %47, %48, %cst_33 {dimension_numbers = #tpu.dot_dimension_numbers<[2], [2], [1], [1], [0, 0, 0, 1, 1, 1], [0], [0]>} : vector<2x32x32xbf16>, vector<2x16x32xbf16>, vector<2x32x16xf32> -> vector<2x32x16xf32>
    "tpu.trace_stop"() : () -> ()
    %cst_34 = arith.constant dense<0xFF800000> : vector<2x32xf32>
    %50 = vector.multi_reduction <maximumf>, %49, %cst_34 [2] : vector<2x32x16xf32> to vector<2x32xf32>
    %51 = vector.shape_cast %50 : vector<2x32xf32> to vector<2x32x1xf32>
    %52 = vector.broadcast %51 : vector<2x32x1xf32> to vector<2x32x16xf32>
    %53 = arith.subf %49, %52 : vector<2x32x16xf32>
    %54 = math.exp %53 : vector<2x32x16xf32>
    %cst_35 = arith.constant dense<0.000000e+00> : vector<2x32xf32>
    %55 = vector.multi_reduction <add>, %54, %cst_35 [2] : vector<2x32x16xf32> to vector<2x32xf32>
    %56 = vector.shape_cast %55 : vector<2x32xf32> to vector<2x32x1xf32>
    %57 = tpu.reciprocal %56 {approx = true} : vector<2x32x1xf32> -> vector<2x32x1xf32>
    %58 = vector.broadcast %57 : vector<2x32x1xf32> to vector<2x32x16xf32>
    %59 = arith.mulf %54, %58 : vector<2x32x16xf32>
    %60 = arith.truncf %59 : vector<2x32x16xf32> to vector<2x32x16xbf16>
    %61 = arith.truncf %39 : vector<2x16x32xf32> to vector<2x16x32xbf16>
    "tpu.trace_start"() <{level = 10 : i32, message = "bnk,bkd->bnd"}> : () -> ()
    %cst_36 = arith.constant dense<0.000000e+00> : vector<2x32x32xf32>
    %62 = tpu.matmul %60, %61, %cst_36 {dimension_numbers = #tpu.dot_dimension_numbers<[2], [1], [1], [2], [0, 0, 0, 1, 1, 2], [0], [0]>} : vector<2x32x16xbf16>, vector<2x16x32xbf16>, vector<2x32x32xf32> -> vector<2x32x32xf32>
    "tpu.trace_stop"() : () -> ()
    %63 = vector.shape_cast %36 : vector<32x32xf32> to vector<1x32x32xf32>
    %64 = vector.broadcast %63 : vector<1x32x32xf32> to vector<2x32x32xf32>
    %65 = arith.mulf %62, %64 : vector<2x32x32xf32>
    %66 = vector.extract_strided_slice %65 {offsets = [0, 0, 0], sizes = [2, 8, 32], strides = [1, 1, 1]} : vector<2x32x32xf32> to vector<2x8x32xf32>
    %67 = vector.extract_strided_slice %65 {offsets = [0, 8, 0], sizes = [2, 8, 32], strides = [1, 1, 1]} : vector<2x32x32xf32> to vector<2x8x32xf32>
    %68 = arith.addf %66, %67 : vector<2x8x32xf32>
    %69 = vector.extract_strided_slice %65 {offsets = [0, 16, 0], sizes = [2, 8, 32], strides = [1, 1, 1]} : vector<2x32x32xf32> to vector<2x8x32xf32>
    %70 = arith.addf %68, %69 : vector<2x8x32xf32>
    %71 = vector.extract_strided_slice %65 {offsets = [0, 24, 0], sizes = [2, 8, 32], strides = [1, 1, 1]} : vector<2x32x32xf32> to vector<2x8x32xf32>
    %72 = arith.addf %70, %71 : vector<2x8x32xf32>
    %73 = vector.shape_cast %72 : vector<2x8x32xf32> to vector<16x32xf32>
    %74 = arith.truncf %73 : vector<16x32xf32> to vector<16x32xbf16>
    %c0_37 = arith.constant 0 : index
    %c0_38 = arith.constant 0 : index
    %75 = vector.load %arg6[%c0_37, %c0_38] : memref<32x32xbf16, #tpu.memory_space<vmem>>, vector<32x32xbf16>
    %cst_39 = arith.constant dense<0.000000e+00> : vector<16x32xf32>
    %76 = tpu.matmul %74, %75, %cst_39 {dimension_numbers = #tpu.dot_dimension_numbers<[1], [0], [0], [1], [0, 0, 1, 1], [], []>} : vector<16x32xbf16>, vector<32x32xbf16>, vector<16x32xf32> -> vector<16x32xf32>
    %77 = vector.broadcast %3 : vector<1x32xf32> to vector<16x32xf32>
    %78 = arith.addf %76, %77 : vector<16x32xf32>
    %cst_40 = arith.constant dense<0.000000e+00> : vector<16xf32>
    %79 = vector.multi_reduction <add>, %78, %cst_40 [1] : vector<16x32xf32> to vector<16xf32>
    %80 = vector.shape_cast %79 : vector<16xf32> to vector<16x1xf32>
    %cst_41 = arith.constant 3.200000e+01 : f32
    %81 = vector.broadcast %cst_41 : f32 to vector<16x1xf32>
    %82 = arith.divf %80, %81 : vector<16x1xf32>
    %83 = vector.broadcast %82 : vector<16x1xf32> to vector<16x32xf32>
    %84 = arith.subf %78, %83 : vector<16x32xf32>
    %85 = arith.mulf %84, %84 : vector<16x32xf32>
    %cst_42 = arith.constant dense<0.000000e+00> : vector<16xf32>
    %86 = vector.multi_reduction <add>, %85, %cst_42 [1] : vector<16x32xf32> to vector<16xf32>
    %87 = vector.shape_cast %86 : vector<16xf32> to vector<16x1xf32>
    %cst_43 = arith.constant 3.200000e+01 : f32
    %88 = vector.broadcast %cst_43 : f32 to vector<16x1xf32>
    %89 = arith.divf %87, %88 : vector<16x1xf32>
    %90 = vector.broadcast %82 : vector<16x1xf32> to vector<16x32xf32>
    %91 = arith.subf %78, %90 : vector<16x32xf32>
    %cst_44 = arith.constant 9.99999974E-6 : f32
    %92 = vector.broadcast %cst_44 : f32 to vector<16x1xf32>
    %93 = arith.addf %89, %92 : vector<16x1xf32>
    %94 = math.rsqrt %93 : vector<16x1xf32>
    %95 = vector.broadcast %94 : vector<16x1xf32> to vector<16x32xf32>
    %96 = arith.mulf %91, %95 : vector<16x32xf32>
    %97 = vector.broadcast %4 : vector<1x32xf32> to vector<16x32xf32>
    %98 = arith.mulf %96, %97 : vector<16x32xf32>
    %99 = vector.broadcast %5 : vector<1x32xf32> to vector<16x32xf32>
    %100 = arith.addf %98, %99 : vector<16x32xf32>
    %101 = arith.truncf %100 : vector<16x32xf32> to vector<16x32xbf16>
    %c0_45 = arith.constant 0 : index
    %c0_46 = arith.constant 0 : index
    %102 = vector.load %arg7[%c0_45, %c0_46] : memref<32x64xbf16, #tpu.memory_space<vmem>>, vector<32x64xbf16>
    %cst_47 = arith.constant dense<0.000000e+00> : vector<16x64xf32>
    %103 = tpu.matmul %101, %102, %cst_47 {dimension_numbers = #tpu.dot_dimension_numbers<[1], [0], [0], [1], [0, 0, 1, 1], [], []>} : vector<16x32xbf16>, vector<32x64xbf16>, vector<16x64xf32> -> vector<16x64xf32>
    %104 = vector.broadcast %9 : vector<1x64xf32> to vector<16x64xf32>
    %105 = arith.addf %103, %104 : vector<16x64xf32>
    %cst_48 = arith.constant 0.000000e+00 : f32
    %106 = vector.broadcast %cst_48 : f32 to vector<16x64xf32>
    %107 = arith.maximumf %105, %106 : vector<16x64xf32>
    %108 = arith.truncf %107 : vector<16x64xf32> to vector<16x64xbf16>
    %c0_49 = arith.constant 0 : index
    %c0_50 = arith.constant 0 : index
    %109 = vector.load %arg8[%c0_49, %c0_50] : memref<64x32xbf16, #tpu.memory_space<vmem>>, vector<64x32xbf16>
    %cst_51 = arith.constant dense<0.000000e+00> : vector<16x32xf32>
    %110 = tpu.matmul %108, %109, %cst_51 {dimension_numbers = #tpu.dot_dimension_numbers<[1], [0], [0], [1], [0, 0, 1, 1], [], []>} : vector<16x64xbf16>, vector<64x32xbf16>, vector<16x32xf32> -> vector<16x32xf32>
    %111 = vector.broadcast %8 : vector<1x32xf32> to vector<16x32xf32>
    %112 = arith.addf %110, %111 : vector<16x32xf32>
    %113 = arith.addf %100, %112 : vector<16x32xf32>
    %cst_52 = arith.constant dense<0.000000e+00> : vector<16xf32>
    %114 = vector.multi_reduction <add>, %113, %cst_52 [1] : vector<16x32xf32> to vector<16xf32>
    %115 = vector.shape_cast %114 : vector<16xf32> to vector<16x1xf32>
    %cst_53 = arith.constant 3.200000e+01 : f32
    %116 = vector.broadcast %cst_53 : f32 to vector<16x1xf32>
    %117 = arith.divf %115, %116 : vector<16x1xf32>
    %118 = vector.broadcast %117 : vector<16x1xf32> to vector<16x32xf32>
    %119 = arith.subf %113, %118 : vector<16x32xf32>
    %120 = arith.mulf %119, %119 : vector<16x32xf32>
    %cst_54 = arith.constant dense<0.000000e+00> : vector<16xf32>
    %121 = vector.multi_reduction <add>, %120, %cst_54 [1] : vector<16x32xf32> to vector<16xf32>
    %122 = vector.shape_cast %121 : vector<16xf32> to vector<16x1xf32>
    %cst_55 = arith.constant 3.200000e+01 : f32
    %123 = vector.broadcast %cst_55 : f32 to vector<16x1xf32>
    %124 = arith.divf %122, %123 : vector<16x1xf32>
    %125 = vector.broadcast %117 : vector<16x1xf32> to vector<16x32xf32>
    %126 = arith.subf %113, %125 : vector<16x32xf32>
    %cst_56 = arith.constant 9.99999974E-6 : f32
    %127 = vector.broadcast %cst_56 : f32 to vector<16x1xf32>
    %128 = arith.addf %124, %127 : vector<16x1xf32>
    %129 = math.rsqrt %128 : vector<16x1xf32>
    %130 = vector.broadcast %129 : vector<16x1xf32> to vector<16x32xf32>
    %131 = arith.mulf %126, %130 : vector<16x32xf32>
    %132 = vector.broadcast %6 : vector<1x32xf32> to vector<16x32xf32>
    %133 = arith.mulf %131, %132 : vector<16x32xf32>
    %134 = vector.broadcast %7 : vector<1x32xf32> to vector<16x32xf32>
    %135 = arith.addf %133, %134 : vector<16x32xf32>
    %136 = vector.shape_cast %135 : vector<16x32xf32> to vector<2x8x32xf32>
    %c0_57 = arith.constant 0 : index
    %c0_58 = arith.constant 0 : index
    %c0_59 = arith.constant 0 : index
    %137 = vector.load %arg11[%c0_57, %c0_58, %c0_59] : memref<2x8x32xf32, #tpu.memory_space<vmem>>, vector<2x8x32xf32>
    tpu.vector_store %arg11[%c0_57, %c0_58, %c0_59], %136 {strides = array<i32>} : memref<2x8x32xf32, #tpu.memory_space<vmem>>, vector<2x8x32xf32>,
    return
  }
  func.func @transform_0(%arg0: i32) -> (i32, i32, i32) {
    %c0_i32 = arith.constant 0 : i32
    %c0_i32_0 = arith.constant 0 : i32
    %c0_i32_1 = arith.constant 0 : i32
    return %arg0, %c0_i32, %c0_i32_0 : i32, i32, i32
  }
  func.func @transform_1(%arg0: i32) -> (i32, i32, i32) {
    %c0_i32 = arith.constant 0 : i32
    %c0_i32_0 = arith.constant 0 : i32
    %c0_i32_1 = arith.constant 0 : i32
    return %arg0, %c0_i32, %c0_i32_0 : i32, i32, i32
  }
  func.func @transform_2(%arg0: i32) -> (i32, i32, i32) {
    %c0_i32 = arith.constant 0 : i32
    %c0_i32_0 = arith.constant 0 : i32
    %c0_i32_1 = arith.constant 0 : i32
    return %arg0, %c0_i32, %c0_i32_0 : i32, i32, i32
  }
  func.func @transform_3(%arg0: i32) -> (i32, i32, i32) {
    %c0_i32 = arith.constant 0 : i32
    %c0_i32_0 = arith.constant 0 : i32
    %c0_i32_1 = arith.constant 0 : i32
    return %arg0, %c0_i32, %c0_i32_0 : i32, i32, i32
  }
  func.func @transform_4(%arg0: i32) -> (i32, i32) {
    %c0_i32 = arith.constant 0 : i32
    %c0_i32_0 = arith.constant 0 : i32
    %c0_i32_1 = arith.constant 0 : i32
    return %c0_i32, %c0_i32_0 : i32, i32
  }
  func.func @transform_5(%arg0: i32) -> (i32, i32) {
    %c0_i32 = arith.constant 0 : i32
    %c0_i32_0 = arith.constant 0 : i32
    %c0_i32_1 = arith.constant 0 : i32
    return %c0_i32, %c0_i32_0 : i32, i32
  }
  func.func @transform_6(%arg0: i32) -> (i32, i32) {
    %c0_i32 = arith.constant 0 : i32
    %c0_i32_0 = arith.constant 0 : i32
    %c0_i32_1 = arith.constant 0 : i32
    return %c0_i32, %c0_i32_0 : i32, i32
  }
  func.func @transform_7(%arg0: i32) -> (i32, i32) {
    %c0_i32 = arith.constant 0 : i32
    %c0_i32_0 = arith.constant 0 : i32
    %c0_i32_1 = arith.constant 0 : i32
    return %c0_i32, %c0_i32_0 : i32, i32
  }
  func.func @transform_8(%arg0: i32) -> (i32, i32) {
    %c0_i32 = arith.constant 0 : i32
    %c0_i32_0 = arith.constant 0 : i32
    %c0_i32_1 = arith.constant 0 : i32
    return %c0_i32, %c0_i32_0 : i32, i32
  }
  func.func @transform_9(%arg0: i32) -> (i32, i32, i32) {
    %c0_i32 = arith.constant 0 : i32
    %c0_i32_0 = arith.constant 0 : i32
    %c0_i32_1 = arith.constant 0 : i32
    %c0_i32_2 = arith.constant 0 : i32
    return %c0_i32, %c0_i32_0, %c0_i32_1 : i32, i32, i32
  }
  func.func @transform_10(%arg0: i32) -> (i32, i32, i32) {
    %c0_i32 = arith.constant 0 : i32
    %c0_i32_0 = arith.constant 0 : i32
    %c0_i32_1 = arith.constant 0 : i32
    return %arg0, %c0_i32, %c0_i32_0 : i32, i32, i32
  }
}

</mosaic_0001>

<llo_original>
// kernel: tpu_custom_call.1
$region0: #{tpu_custom_call.1}
  #allocation0 [shape = 'u32[]', space=smem, size = 0x4, offset = 0x4, fixed_abs, tag = 'smem constant byte address 0x4 - core index']
  #allocation1 [shape = 'u32[72,128]{1,0:T(1,128)}', space=vmem, size = 0x9000, scoped, tag = 'internal scratch']
  %s0 = inlined_call_operand.vmem [shape: f32[2,8,32], index: 0, kind: input, shape index: {}]
  %s1 = inlined_call_operand.vmem [shape: f32[2,16,32], index: 1, kind: input, shape index: {}]
  %s2 = inlined_call_operand.hbm [shape: f32[2,8,32], index: 2, kind: input, shape index: {}]
  %s3 = inlined_call_operand.hbm [shape: f32[2,16,32], index: 3, kind: input, shape index: {}]
  %s4 = inlined_call_operand.hbm [shape: bf16[32,96], index: 4, kind: input, shape index: {}]
  %s5 = inlined_call_operand.hbm [shape: bf16[32,32], index: 5, kind: input, shape index: {}]
  %s6 = inlined_call_operand.hbm [shape: bf16[32,64], index: 6, kind: input, shape index: {}]
  %s7 = inlined_call_operand.vmem [shape: bf16[64,32], index: 7, kind: input, shape index: {}]
  %s8 = inlined_call_operand.hbm [shape: f32[10,64], index: 8, kind: input, shape index: {}]
  %s9 = inlined_call_operand.hbm [shape: f32[2,32,32], index: 9, kind: input, shape index: {}]
  %s10 = inlined_call_operand.hbm [shape: f32[2,8,32], index: 10, kind: output, shape index: {}]
  %s11 = sld [smem:[#allocation0]]
  $region78: #{tpu_custom_call.1} parent=0
    _
  %s13 = ssub.s32 1, %s11
  %s14 = scalar_select 0, %s13, %s11
  $region1: #{tpu_custom_call.1} parent=0
    #allocation2 [shape = 'u8[8192]{0}', space=vmem, size = 0x2000, scoped, tag = 'input window, operand 2, single buffered']
    #allocation3 [shape = 's32[1]{0}', space=sflag, size = 0x4, scoped, tag = 'scoped memory for tpu_custom_call.1']
    #allocation4 [shape = 's32[1]{0}', space=sflag, size = 0x4, scoped, tag = 'scoped memory for tpu_custom_call.1']
    #allocation5 [shape = 'u8[16384]{0}', space=vmem, size = 0x4000, scoped, tag = 'input window, operand 3, single buffered']
    #allocation6 [shape = 's32[1]{0}', space=sflag, size = 0x4, scoped, tag = 'scoped memory for tpu_custom_call.1']
    #allocation7 [shape = 'u8[8192]{0}', space=vmem, size = 0x2000, scoped, tag = 'input window, operand 4, single buffered']
    #allocation8 [shape = 'u8[8192]{0}', space=vmem, size = 0x2000, scoped, tag = 'input window, operand 5, single buffered']
    #allocation9 [shape = 's32[1]{0}', space=sflag, size = 0x4, scoped, tag = 'scoped memory for tpu_custom_call.1']
    #allocation10 [shape = 'u8[8192]{0}', space=vmem, size = 0x2000, scoped, tag = 'input window, operand 6, single buffered']
    #allocation11 [shape = 'u8[8192]{0}', space=vmem, size = 0x2000, scoped, tag = 'input window, operand 8, single buffered']
    #allocation12 [shape = 's32[1]{0}', space=sflag, size = 0x4, scoped, tag = 'scoped memory for tpu_custom_call.1']
    #allocation13 [shape = 'u8[32768]{0}', space=vmem, size = 0x8000, scoped, tag = 'input window, operand 9, single buffered']
    #allocation14 [shape = 'u8[8192]{0}', space=vmem, size = 0x2000, scoped, tag = 'output window, operand 0, single buffered']
    %15 = vsyncpa [#allocation3], 0
    %16 = vsyncpa [#allocation6], 0
    %17 = vsyncpa [#allocation9], 0
    %18 = vsyncpa [#allocation12], 0
    %19 = vsyncpa [#allocation4], 0
    // Predicated region
    $region2: #{tpu_custom_call.1} parent=1 // pred_check
      _
    $region3: #{tpu_custom_call.1} parent=1 // pred_check_branch
      %21 = sbr.rel (0) target = $region5
    $region4: #{tpu_custom_call.1} parent=1 // pred_region
      _
    $region5: #{tpu_custom_call.1} parent=1 // pred_fallthru
      _
    // Predicated region
    $region6: #{tpu_custom_call.1} parent=1 // pred_check
      _
    $region7: #{tpu_custom_call.1} parent=1 // pred_check_branch
      %23 = sbr.rel (0) target = $region9
    $region8: #{tpu_custom_call.1} parent=1 // pred_region
      _
    $region9: #{tpu_custom_call.1} parent=1 // pred_fallthru
      _
    // Predicated region
    $region10: #{tpu_custom_call.1} parent=1 // pred_check
      _
    $region11: #{tpu_custom_call.1} parent=1 // pred_check_branch
      %25 = sbr.rel (0) target = $region13
    $region12: #{tpu_custom_call.1} parent=1 // pred_region
      %27 = vsyncadd [#allocation3], 0
      %s28 = sshll.u32 %s2, 4
      %s29 = int_to_ptr.hbm [resolvable:$true] %s28
      %s30 = sshll.u32 [#allocation2], 4
      %s31 = int_to_ptr.vmem [resolvable:$true] %s30
      %36 = dma.hbm_to_vmem [thread:$0]  %s29, 256, %s31, [#allocation3], 128, 128, 8
    $region13: #{tpu_custom_call.1} parent=1 // pred_fallthru
      _
    // Predicated region
    $region14: #{tpu_custom_call.1} parent=1 // pred_check
      _
    $region15: #{tpu_custom_call.1} parent=1 // pred_check_branch
      %38 = sbr.rel (0) target = $region17
    $region16: #{tpu_custom_call.1} parent=1 // pred_region
      %40 = vsyncadd [#allocation6], 0
      %s41 = sshll.u32 %s3, 4
      %s42 = int_to_ptr.hbm [resolvable:$true] %s41
      %s43 = sshll.u32 [#allocation5], 4
      %s44 = int_to_ptr.vmem [resolvable:$true] %s43
      %49 = dma.hbm_to_vmem [thread:$0]  %s42, 512, %s44, [#allocation6], 128, 128, 8
    $region17: #{tpu_custom_call.1} parent=1 // pred_fallthru
      _
    // Predicated region
    $region18: #{tpu_custom_call.1} parent=1 // pred_check
      _
    $region19: #{tpu_custom_call.1} parent=1 // pred_check_branch
      %51 = sbr.rel (0) target = $region21
    $region20: #{tpu_custom_call.1} parent=1 // pred_region
      %53 = vsyncadd [#allocation6], 0
      %s54 = sshll.u32 %s4, 4
      %s55 = int_to_ptr.hbm [resolvable:$true] %s54
      %s56 = sshll.u32 [#allocation7], 4
      %s57 = int_to_ptr.vmem [resolvable:$true] %s56
      %62 = dma.hbm_to_vmem [thread:$0]  %s55, 256, %s57, [#allocation6], 64, 64, 4
    $region21: #{tpu_custom_call.1} parent=1 // pred_fallthru
      _
    // Predicated region
    $region22: #{tpu_custom_call.1} parent=1 // pred_check
      _
    $region23: #{tpu_custom_call.1} parent=1 // pred_check_branch
      %64 = sbr.rel (0) target = $region25
    $region24: #{tpu_custom_call.1} parent=1 // pred_region
      %66 = vsyncadd [#allocation9], 0
      %s67 = sshll.u32 %s5, 4
      %s68 = int_to_ptr.hbm [resolvable:$true] %s67
      %s69 = sshll.u32 [#allocation8], 4
      %s70 = int_to_ptr.vmem [resolvable:$true] %s69
      %75 = dma.hbm_to_vmem [thread:$0]  %s68, 256, %s70, [#allocation9], 64, 64, 4
    $region25: #{tpu_custom_call.1} parent=1 // pred_fallthru
      _
    // Predicated region
    $region26: #{tpu_custom_call.1} parent=1 // pred_check
      _
    $region27: #{tpu_custom_call.1} parent=1 // pred_check_branch
      %77 = sbr.rel (0) target = $region29
    $region28: #{tpu_custom_call.1} parent=1 // pred_region
      %79 = vsyncadd [#allocation9], 0
      %s80 = sshll.u32 %s6, 4
      %s81 = int_to_ptr.hbm [resolvable:$true] %s80
      %s82 = sshll.u32 [#allocation10], 4
      %s83 = int_to_ptr.vmem [resolvable:$true] %s82
      %88 = dma.hbm_to_vmem [thread:$0]  %s81, 256, %s83, [#allocation9], 64, 64, 4
    $region29: #{tpu_custom_call.1} parent=1 // pred_fallthru
      _
    // Predicated region
    $region30: #{tpu_custom_call.1} parent=1 // pred_check
      _
    $region31: #{tpu_custom_call.1} parent=1 // pred_check_branch
      %90 = sbr.rel (0) target = $region33
    $region32: #{tpu_custom_call.1} parent=1 // pred_region
      _
    $region33: #{tpu_custom_call.1} parent=1 // pred_fallthru
      _
    // Predicated region
    $region34: #{tpu_custom_call.1} parent=1 // pred_check
      _
    $region35: #{tpu_custom_call.1} parent=1 // pred_check_branch
      %92 = sbr.rel (0) target = $region37
    $region36: #{tpu_custom_call.1} parent=1 // pred_region
      %94 = vsyncadd [#allocation12], 0
      %s95 = sshll.u32 %s8, 4
      %s96 = int_to_ptr.hbm [resolvable:$true] %s95
      %s97 = sshll.u32 [#allocation11], 4
      %s98 = int_to_ptr.vmem [resolvable:$true] %s97
      %103 = dma.hbm_to_vmem [thread:$0]  %s96, 256, %s98, [#allocation12], 128, 128, 8
    $region37: #{tpu_custom_call.1} parent=1 // pred_fallthru
      _
    // Predicated region
    $region38: #{tpu_custom_call.1} parent=1 // pred_check
      _
    $region39: #{tpu_custom_call.1} parent=1 // pred_check_branch
      %105 = sbr.rel (0) target = $region41
    $region40: #{tpu_custom_call.1} parent=1 // pred_region
      %107 = vsyncadd [#allocation12], 0
      %s108 = sshll.u32 %s9, 4
      %s109 = int_to_ptr.hbm [resolvable:$true] %s108
      %s110 = sshll.u32 [#allocation13], 4
      %s111 = int_to_ptr.vmem [resolvable:$true] %s110
      %116 = dma.hbm_to_vmem [thread:$0]  %s109, 1024, %s111, [#allocation12], 128, 128, 8
    $region41: #{tpu_custom_call.1} parent=1 // pred_fallthru
      _
    // Predicated region
    $region42: #{tpu_custom_call.1} parent=1 // pred_check
      _
    $region43: #{tpu_custom_call.1} parent=1 // pred_check_branch
      %118 = sbr.rel (0) target = $region45
    $region44: #{tpu_custom_call.1} parent=1 // pred_region
      %120 = dma.done [#allocation3], 256
    $region45: #{tpu_custom_call.1} parent=1 // pred_fallthru
      _
    // Predicated region
    $region46: #{tpu_custom_call.1} parent=1 // pred_check
      _
    $region47: #{tpu_custom_call.1} parent=1 // pred_check_branch
      %122 = sbr.rel (0) target = $region49
    $region48: #{tpu_custom_call.1} parent=1 // pred_region
      %124 = dma.done [#allocation6], 512
    $region49: #{tpu_custom_call.1} parent=1 // pred_fallthru
      _
    // Predicated region
    $region50: #{tpu_custom_call.1} parent=1 // pred_check
      _
    $region51: #{tpu_custom_call.1} parent=1 // pred_check_branch
      %126 = sbr.rel (0) target = $region53
    $region52: #{tpu_custom_call.1} parent=1 // pred_region
      %128 = dma.done [#allocation6], 256
    $region53: #{tpu_custom_call.1} parent=1 // pred_fallthru
      _
    // Predicated region
    $region54: #{tpu_custom_call.1} parent=1 // pred_check
      _
    $region55: #{tpu_custom_call.1} parent=1 // pred_check_branch
      %130 = sbr.rel (0) target = $region57
    $region56: #{tpu_custom_call.1} parent=1 // pred_region
      %132 = dma.done [#allocation9], 256
    $region57: #{tpu_custom_call.1} parent=1 // pred_fallthru
      _
    // Predicated region
    $region58: #{tpu_custom_call.1} parent=1 // pred_check
      _
    $region59: #{tpu_custom_call.1} parent=1 // pred_check_branch
      %134 = sbr.rel (0) target = $region61
    $region60: #{tpu_custom_call.1} parent=1 // pred_region
      %136 = dma.done [#allocation9], 256
    $region61: #{tpu_custom_call.1} parent=1 // pred_fallthru
      _
    // Predicated region
    $region62: #{tpu_custom_call.1} parent=1 // pred_check
      _
    $region63: #{tpu_custom_call.1} parent=1 // pred_check_branch
      %138 = sbr.rel (0) target = $region65
    $region64: #{tpu_custom_call.1} parent=1 // pred_region
      %140 = dma.done [#allocation12], 256
    $region65: #{tpu_custom_call.1} parent=1 // pred_fallthru
      _
    // Predicated region
    $region66: #{tpu_custom_call.1} parent=1 // pred_check
      _
    $region67: #{tpu_custom_call.1} parent=1 // pred_check_branch
      %142 = sbr.rel (0) target = $region69
    $region68: #{tpu_custom_call.1} parent=1 // pred_region
      %144 = dma.done [#allocation12], 1024
    $region69: #{tpu_custom_call.1} parent=1 // pred_fallthru
      _
    %v146 = vld [vmem:[#allocation11] sm:$0x1]
    %v147 = vld [vmem:[#allocation11 + $0x1] sm:$0x1]
    %v148 = vld [vmem:[#allocation11 + $0x2] sm:$0x1]
    %v149 = vld [vmem:[#allocation11 + $0x3] sm:$0x1]
    %v150 = vld [vmem:[#allocation11 + $0x4] sm:$0x1]
    %v151 = vld [vmem:[#allocation11 + $0x5] sm:$0x1]
    %v152 = vld [vmem:[#allocation11 + $0x6] sm:$0x1]
    %v153 = vld [vmem:[#allocation11 + $0x7] sm:$0x1]
    %v154 = vld [vmem:[#allocation11 + $0x8] sm:$0x1]
    %v155 = vld [vmem:[#allocation11 + $0x9] sm:$0x1]
    %v156 = vld [vmem:[%s0] sm:$0xff]
    %v157 = vld [vmem:[%s0 + $0x8] sm:$0xff]
    %v158 = vld [vmem:[#allocation2] sm:$0xff]
    %v159 = vld [vmem:[#allocation2 + $0x8] sm:$0xff]
    %v160 = vadd.f32 %v156, %v158
    %v161 = vadd.f32 %v157, %v159
    %v162 = vld [vmem:[%s1] sm:$0xff]
    %v163 = vld [vmem:[%s1 + $0x8] sm:$0xff]
    %v164 = vld [vmem:[%s1 + $0x10] sm:$0xff]
    %v165 = vld [vmem:[%s1 + $0x18] sm:$0xff]
    %v166 = vld [vmem:[#allocation5] sm:$0xff]
    %v167 = vld [vmem:[#allocation5 + $0x8] sm:$0xff]
    %v168 = vld [vmem:[#allocation5 + $0x10] sm:$0xff]
    %v169 = vld [vmem:[#allocation5 + $0x18] sm:$0xff]
    %v170 = vadd.f32 %v162, %v166
    %v171 = vadd.f32 %v163, %v167
    %v172 = vadd.f32 %v164, %v168
    %v173 = vadd.f32 %v165, %v169
    %v174 = vpack.c.bf16 %v161, %v160
    %v175 = vpack.c.bf16 %v171, %v170
    %v176 = vpack.c.bf16 %v173, %v172
    %v177 = vpack.c.bf16 %v163, %v162
    %v178 = vpack.c.bf16 %v165, %v164
    %v179 = vld [vmem:[#allocation7] sm:$0xf]
    %v180 = vld [vmem:[#allocation7 + $0x4] sm:$0xf]
    %v181 = vld [vmem:[#allocation7 + $0x8] sm:$0xf]
    %v182 = vld [vmem:[#allocation7 + $0xc] sm:$0xf]
    %v187 = vunpack.c.l.b16 %v179
    %v188 = vunpack.c.l.b16 %v180
    %v189 = vunpack.c.l.b16 %v181
    %v190 = vunpack.c.l.b16 %v182
    %v191 = vpack.c.b16 %v188, %v187
    %v192 = vpack.c.b16 %v190, %v189
    %vm195 = vcmask 261120
    %v197 = vsel %vm195, %v174, 0
    %v200 = vsel %vm195, %v175, 0
    %v203 = vsel %vm195, %v176, 0
    %v206 = vsel %vm195, %v177, 0
    %v209 = vsel %vm195, %v178, 0
    %211 = vmatpush.bf16.msra.mxu0 0
    %212 = vmatpush.bf16.msra.mxu0 0
    %213 = vmatpush.bf16.msra.mxu0 0
    %214 = vmatpush.bf16.msra.mxu0 0
    %215 = vmatpush.bf16.msra.mxu0 0
    %216 = vmatpush.bf16.msra.mxu0 0
    %217 = vmatpush.bf16.msra.mxu0 %v192
    %218 = vmatpush.bf16.msra.mxu0 %v191
    %219 = vmatmul.bf16.gmra.mxu0 %v197
    %v220 = vpop.f32.mrf.mxu0
    %v221 = vadd.f32 0.0, %v220
    %v222 = vpop.f32.mrf.mxu0
    %v223 = vadd.f32 0.0, %v222
    %224 = vmatmul.bf16.gmra.mxu0 %v200
    %v225 = vpop.f32.mrf.mxu0
    %v226 = vadd.f32 0.0, %v225
    %v227 = vpop.f32.mrf.mxu0
    %v228 = vadd.f32 0.0, %v227
    %229 = vmatmul.bf16.gmra.mxu0 %v203
    %v230 = vpop.f32.mrf.mxu0
    %v231 = vadd.f32 0.0, %v230
    %v232 = vpop.f32.mrf.mxu0
    %v233 = vadd.f32 0.0, %v232
    %234 = vmatmul.bf16.gmra.mxu0 %v206
    %v235 = vpop.f32.mrf.mxu0
    %v236 = vadd.f32 0.0, %v235
    %v237 = vpop.f32.mrf.mxu0
    %v238 = vadd.f32 0.0, %v237
    %239 = vmatmul.bf16.gmra.mxu0 %v209
    %v240 = vpop.f32.mrf.mxu0
    %v241 = vadd.f32 0.0, %v240
    %v242 = vpop.f32.mrf.mxu0
    %v243 = vadd.f32 0.0, %v242
    %244 = vdwg.mxu0
    %v245 = vperm.slane %v146, 0
    %v246 = vadd.f32 %v221, %v245
    %v247 = vadd.f32 %v223, %v245
    %v248 = vperm.slane %v147, 0
    %250 = vrot.lane.b32.xlu0 %v248, 32
    %v251 = vpop.permute.xlu0 %250
    %v253 = vadd.f32 %v226, %v251
    %v254 = vadd.f32 %v228, %v251
    %v255 = vadd.f32 %v231, %v251
    %v256 = vadd.f32 %v233, %v251
    %v257 = vperm.slane %v148, 0
    %259 = vrot.lane.b32.xlu0 %v257, 64
    %v260 = vpop.permute.xlu0 %259
    %v262 = vadd.f32 %v236, %v260
    %v263 = vadd.f32 %v238, %v260
    %v264 = vadd.f32 %v241, %v260
    %v265 = vadd.f32 %v243, %v260
    %v266 = vld [vmem:[#allocation13] sm:$0xff]
    %v267 = vld [vmem:[#allocation13 + $0x8] sm:$0xff]
    %v268 = vld [vmem:[#allocation13 + $0x10] sm:$0xff]
    %v269 = vld [vmem:[#allocation13 + $0x18] sm:$0xff]
    %s270 = scalar_lea.vmem [#allocation13], 32
    %v271 = vld [vmem:[%s270] sm:$0xff]
    %v272 = vld [vmem:[%s270 + $0x8] sm:$0xff]
    %v273 = vld [vmem:[%s270 + $0x10] sm:$0xff]
    %v274 = vld [vmem:[%s270 + $0x18] sm:$0xff]
    %v275 = vmul.f32 %v246, %v266
    %v276 = vmul.f32 %v246, %v267
    %v277 = vmul.f32 %v246, %v268
    %v278 = vmul.f32 %v246, %v269
    %v279 = vmul.f32 %v247, %v266
    %v280 = vmul.f32 %v247, %v267
    %v281 = vmul.f32 %v247, %v268
    %v282 = vmul.f32 %v247, %v269
    %v283 = vpack.c.bf16 %v275, %v275
    %v284 = vpack.c.bf16 %v276, %v276
    %v285 = vpack.c.bf16 %v277, %v277
    %v286 = vpack.c.bf16 %v278, %v278
    %v287 = vpack.c.bf16 %v279, %v279
    %v288 = vpack.c.bf16 %v280, %v280
    %v289 = vpack.c.bf16 %v281, %v281
    %v290 = vpack.c.bf16 %v282, %v282
    %v291 = vpack.c.bf16 %v253, %v253
    %v292 = vpack.c.bf16 %v254, %v254
    %v293 = vpack.c.bf16 %v255, %v255
    %v294 = vpack.c.bf16 %v256, %v256
    %v299 = vunpack.c.l.b16 %v283
    %v300 = vunpack.c.l.b16 %v284
    %v301 = vunpack.c.l.b16 %v285
    %v302 = vunpack.c.l.b16 %v286
    %v303 = vpack.c.b16 %v300, %v299
    %v304 = vpack.c.b16 %v302, %v301
    %v307 = vunpack.c.l.b16 %v291
    %v308 = vunpack.c.l.b16 %v292
    %v309 = vpack.c.b16 %v308, %v307
    %310 = vrot.lane.b32.xlu0 %v309, 96
    %v311 = vpop.permute.xlu0 %310
    %v313 = vsel %vm195, %v303, 0
    %v316 = vsel %vm195, %v304, 0
    %v319 = vsel %vm195, %v311, 0
    %321 = vmatpush.bf16.xpose.msra.mxu0 0
    %322 = vmatpush.bf16.xpose.msra.mxu0 0
    %323 = vmatpush.bf16.xpose.msra.mxu0 0
    %324 = vmatpush.bf16.xpose.msra.mxu0 0
    %325 = vmatpush.bf16.xpose.msra.mxu0 0
    %326 = vmatpush.bf16.xpose.msra.mxu0 0
    %327 = vmatpush.bf16.xpose.msra.mxu0 0
    %328 = vmatpush.bf16.xpose.msra.mxu0 %v319
    %329 = vmatmul.bf16.gmra.mxu0 %v313
    %v330 = vpop.f32.mrf.mxu0
    %v331 = vadd.f32 0.0, %v330
    %v332 = vpop.f32.mrf.mxu0
    %v333 = vadd.f32 0.0, %v332
    %334 = vmatmul.bf16.gmra.mxu0 %v316
    %v335 = vpop.f32.mrf.mxu0
    %v336 = vadd.f32 0.0, %v335
    %v337 = vpop.f32.mrf.mxu0
    %v338 = vadd.f32 0.0, %v337
    %339 = vdwg.mxu0
    %v344 = vunpack.c.l.b16 %v287
    %v345 = vunpack.c.l.b16 %v288
    %v346 = vunpack.c.l.b16 %v289
    %v347 = vunpack.c.l.b16 %v290
    %v348 = vpack.c.b16 %v345, %v344
    %v349 = vpack.c.b16 %v347, %v346
    %v352 = vunpack.c.l.b16 %v293
    %v353 = vunpack.c.l.b16 %v294
    %v354 = vpack.c.b16 %v353, %v352
    %355 = vrot.lane.b32.xlu0 %v354, 96
    %v356 = vpop.permute.xlu0 %355
    %v358 = vsel %vm195, %v348, 0
    %v361 = vsel %vm195, %v349, 0
    %v364 = vsel %vm195, %v356, 0
    %366 = vmatpush.bf16.xpose.msra.mxu0 0
    %367 = vmatpush.bf16.xpose.msra.mxu0 0
    %368 = vmatpush.bf16.xpose.msra.mxu0 0
    %369 = vmatpush.bf16.xpose.msra.mxu0 0
    %370 = vmatpush.bf16.xpose.msra.mxu0 0
    %371 = vmatpush.bf16.xpose.msra.mxu0 0
    %372 = vmatpush.bf16.xpose.msra.mxu0 0
    %373 = vmatpush.bf16.xpose.msra.mxu0 %v364
    %374 = vmatmul.bf16.gmra.mxu0 %v358
    %v375 = vpop.f32.mrf.mxu0
    %v376 = vadd.f32 0.0, %v375
    %v377 = vpop.f32.mrf.mxu0
    %v378 = vadd.f32 0.0, %v377
    %379 = vmatmul.bf16.gmra.mxu0 %v361
    %v380 = vpop.f32.mrf.mxu0
    %v381 = vadd.f32 0.0, %v380
    %v382 = vpop.f32.mrf.mxu0
    %v383 = vadd.f32 0.0, %v382
    %384 = vdwg.mxu0
    %vm385 = vcmask 130048
    %v386 = vsel %vm385, %v331, -inf
    %387 = vmax.xlane.f32.xlu0 %v386
    %v388 = vpop.xlane.xlu0 %387
    %v389 = vsel %vm385, %v333, -inf
    %390 = vmax.xlane.f32.xlu0 %v389
    %v391 = vpop.xlane.xlu0 %390
    %v392 = vsel %vm385, %v336, -inf
    %393 = vmax.xlane.f32.xlu0 %v392
    %v394 = vpop.xlane.xlu0 %393
    %v395 = vsel %vm385, %v338, -inf
    %396 = vmax.xlane.f32.xlu0 %v395
    %v397 = vpop.xlane.xlu0 %396
    %v398 = vsel %vm385, %v376, -inf
    %399 = vmax.xlane.f32.xlu0 %v398
    %v400 = vpop.xlane.xlu0 %399
    %v401 = vsel %vm385, %v378, -inf
    %402 = vmax.xlane.f32.xlu0 %v401
    %v403 = vpop.xlane.xlu0 %402
    %v404 = vsel %vm385, %v381, -inf
    %405 = vmax.xlane.f32.xlu0 %v404
    %v406 = vpop.xlane.xlu0 %405
    %v407 = vsel %vm385, %v383, -inf
    %408 = vmax.xlane.f32.xlu0 %v407
    %v409 = vpop.xlane.xlu0 %408
    %v410 = vsub.f32 %v331, %v388
    %v411 = vsub.f32 %v333, %v391
    %v412 = vsub.f32 %v336, %v394
    %v413 = vsub.f32 %v338, %v397
    %v414 = vsub.f32 %v376, %v400
    %v415 = vsub.f32 %v378, %v403
    %v416 = vsub.f32 %v381, %v406
    %v417 = vsub.f32 %v383, %v409
    %v418 = vmul.f32 %v410, 1.442695
    %v419 = vpow.pop %v418
    %v420 = vmul.f32 %v411, 1.442695
    %v421 = vpow.pop %v420
    %v422 = vmul.f32 %v412, 1.442695
    %v423 = vpow.pop %v422
    %v424 = vmul.f32 %v413, 1.442695
    %v425 = vpow.pop %v424
    %v426 = vmul.f32 %v414, 1.442695
    %v427 = vpow.pop %v426
    %v428 = vmul.f32 %v415, 1.442695
    %v429 = vpow.pop %v428
    %v430 = vmul.f32 %v416, 1.442695
    %v431 = vpow.pop %v430
    %v432 = vmul.f32 %v417, 1.442695
    %v433 = vpow.pop %v432
    %v434 = vsel %vm385, %v419, 0.0
    %435 = vadd.xlane.f32.xlu0 %v434
    %v436 = vpop.xlane.xlu0 %435
    %v437 = vsel %vm385, %v421, 0.0
    %438 = vadd.xlane.f32.xlu0 %v437
    %v439 = vpop.xlane.xlu0 %438
    %v440 = vsel %vm385, %v423, 0.0
    %441 = vadd.xlane.f32.xlu0 %v440
    %v442 = vpop.xlane.xlu0 %441
    %v443 = vsel %vm385, %v425, 0.0
    %444 = vadd.xlane.f32.xlu0 %v443
    %v445 = vpop.xlane.xlu0 %444
    %v446 = vsel %vm385, %v427, 0.0
    %447 = vadd.xlane.f32.xlu0 %v446
    %v448 = vpop.xlane.xlu0 %447
    %v449 = vsel %vm385, %v429, 0.0
    %450 = vadd.xlane.f32.xlu0 %v449
    %v451 = vpop.xlane.xlu0 %450
    %v452 = vsel %vm385, %v431, 0.0
    %453 = vadd.xlane.f32.xlu0 %v452
    %v454 = vpop.xlane.xlu0 %453
    %v455 = vsel %vm385, %v433, 0.0
    %456 = vadd.xlane.f32.xlu0 %v455
    %v457 = vpop.xlane.xlu0 %456
    %v458 = vrcp.pop %v436
    %v459 = vrcp.pop %v439
    %v460 = vrcp.pop %v442
    %v461 = vrcp.pop %v445
    %v462 = vrcp.pop %v448
    %v463 = vrcp.pop %v451
    %v464 = vrcp.pop %v454
    %v465 = vrcp.pop %v457
    %v466 = vmul.f32 %v419, %v458
    %v467 = vmul.f32 %v421, %v459
    %v468 = vmul.f32 %v423, %v460
    %v469 = vmul.f32 %v425, %v461
    %v470 = vmul.f32 %v427, %v462
    %v471 = vmul.f32 %v429, %v463
    %v472 = vmul.f32 %v431, %v464
    %v473 = vmul.f32 %v433, %v465
    %v474 = vpack.c.bf16 %v466, %v466
    %v475 = vpack.c.bf16 %v467, %v467
    %v476 = vpack.c.bf16 %v468, %v468
    %v477 = vpack.c.bf16 %v469, %v469
    %v478 = vpack.c.bf16 %v470, %v470
    %v479 = vpack.c.bf16 %v471, %v471
    %v480 = vpack.c.bf16 %v472, %v472
    %v481 = vpack.c.bf16 %v473, %v473
    %v482 = vpack.c.bf16 %v262, %v262
    %v483 = vpack.c.bf16 %v263, %v263
    %v484 = vpack.c.bf16 %v264, %v264
    %v485 = vpack.c.bf16 %v265, %v265
    %v490 = vunpack.c.l.b16 %v474
    %v491 = vunpack.c.l.b16 %v475
    %v492 = vunpack.c.l.b16 %v476
    %v493 = vunpack.c.l.b16 %v477
    %v494 = vpack.c.b16 %v491, %v490
    %v495 = vpack.c.b16 %v493, %v492
    %v498 = vunpack.c.l.b16 %v482
    %v499 = vunpack.c.l.b16 %v483
    %v500 = vpack.c.b16 %v499, %v498
    %501 = vrot.lane.b32.xlu0 %v500, 64
    %v502 = vpop.permute.xlu0 %501
    %v505 = vsel %vm385, %v494, 0
    %v508 = vsel %vm385, %v495, 0
    %510 = vmatpush.bf16.msra.mxu0 0
    %511 = vmatpush.bf16.msra.mxu0 0
    %512 = vmatpush.bf16.msra.mxu0 0
    %513 = vmatpush.bf16.msra.mxu0 0
    %514 = vmatpush.bf16.msra.mxu0 0
    %515 = vmatpush.bf16.msra.mxu0 0
    %516 = vmatpush.bf16.msra.mxu0 0
    %517 = vmatpush.bf16.msra.mxu0 %v502
    %518 = vmatmul.bf16.gmra.mxu0 %v505
    %v519 = vpop.f32.mrf.mxu0
    %v520 = vadd.f32 0.0, %v519
    %v521 = vpop.f32.mrf.mxu0
    %v522 = vadd.f32 0.0, %v521
    %523 = vmatmul.bf16.gmra.mxu0 %v508
    %v524 = vpop.f32.mrf.mxu0
    %v525 = vadd.f32 0.0, %v524
    %v526 = vpop.f32.mrf.mxu0
    %v527 = vadd.f32 0.0, %v526
    %528 = vdwg.mxu0
    %v533 = vunpack.c.l.b16 %v478
    %v534 = vunpack.c.l.b16 %v479
    %v535 = vunpack.c.l.b16 %v480
    %v536 = vunpack.c.l.b16 %v481
    %v537 = vpack.c.b16 %v534, %v533
    %v538 = vpack.c.b16 %v536, %v535
    %v541 = vunpack.c.l.b16 %v484
    %v542 = vunpack.c.l.b16 %v485
    %v543 = vpack.c.b16 %v542, %v541
    %544 = vrot.lane.b32.xlu0 %v543, 64
    %v545 = vpop.permute.xlu0 %544
    %v548 = vsel %vm385, %v537, 0
    %v551 = vsel %vm385, %v538, 0
    %553 = vmatpush.bf16.msra.mxu0 0
    %554 = vmatpush.bf16.msra.mxu0 0
    %555 = vmatpush.bf16.msra.mxu0 0
    %556 = vmatpush.bf16.msra.mxu0 0
    %557 = vmatpush.bf16.msra.mxu0 0
    %558 = vmatpush.bf16.msra.mxu0 0
    %559 = vmatpush.bf16.msra.mxu0 0
    %560 = vmatpush.bf16.msra.mxu0 %v545
    %561 = vmatmul.bf16.gmra.mxu0 %v548
    %v562 = vpop.f32.mrf.mxu0
    %v563 = vadd.f32 0.0, %v562
    %v564 = vpop.f32.mrf.mxu0
    %v565 = vadd.f32 0.0, %v564
    %566 = vmatmul.bf16.gmra.mxu0 %v551
    %v567 = vpop.f32.mrf.mxu0
    %v568 = vadd.f32 0.0, %v567
    %v569 = vpop.f32.mrf.mxu0
    %v570 = vadd.f32 0.0, %v569
    %571 = vdwg.mxu0
    %v572 = vmul.f32 %v520, %v271
    %v573 = vmul.f32 %v522, %v272
    %v574 = vmul.f32 %v525, %v273
    %v575 = vmul.f32 %v527, %v274
    %v576 = vmul.f32 %v563, %v271
    %v577 = vmul.f32 %v565, %v272
    %v578 = vmul.f32 %v568, %v273
    %v579 = vmul.f32 %v570, %v274
    %v580 = vadd.f32 %v572, %v573
    %v581 = vadd.f32 %v576, %v577
    %v582 = vadd.f32 %v580, %v574
    %v583 = vadd.f32 %v581, %v578
    %v584 = vadd.f32 %v582, %v575
    %v585 = vadd.f32 %v583, %v579
    %v586 = vpack.c.bf16 %v585, %v584
    %v587 = vld [vmem:[#allocation8] sm:$0xf]
    %v588 = vld [vmem:[#allocation8 + $0x4] sm:$0xf]
    %v589 = vld [vmem:[#allocation8 + $0x8] sm:$0xf]
    %v590 = vld [vmem:[#allocation8 + $0xc] sm:$0xf]
    %v591 = vperm.slane %v149, 0
    %v596 = vunpack.c.l.b16 %v587
    %v597 = vunpack.c.l.b16 %v588
    %v598 = vunpack.c.l.b16 %v589
    %v599 = vunpack.c.l.b16 %v590
    %v600 = vpack.c.b16 %v597, %v596
    %v601 = vpack.c.b16 %v599, %v598
    %v605 = vsel %vm195, %v586, 0
    %607 = vmatpush.bf16.msra.mxu0 0
    %608 = vmatpush.bf16.msra.mxu0 0
    %609 = vmatpush.bf16.msra.mxu0 0
    %610 = vmatpush.bf16.msra.mxu0 0
    %611 = vmatpush.bf16.msra.mxu0 0
    %612 = vmatpush.bf16.msra.mxu0 0
    %613 = vmatpush.bf16.msra.mxu0 %v601
    %614 = vmatpush.bf16.msra.mxu0 %v600
    %615 = vmatmul.bf16.gmra.mxu0 %v605
    %v616 = vpop.f32.mrf.mxu0
    %v617 = vadd.f32 %v591, %v616
    %v618 = vpop.f32.mrf.mxu0
    %v619 = vadd.f32 %v591, %v618
    %620 = vdwg.mxu0
    %v621 = vsel %vm195, %v617, 0.0
    %622 = vadd.xlane.f32.xlu0 %v621
    %v623 = vpop.xlane.xlu0 %622
    %v624 = vsel %vm195, %v619, 0.0
    %625 = vadd.xlane.f32.xlu0 %v624
    %v626 = vpop.xlane.xlu0 %625
    %v627 = vrcp.pop 32.0
    %v628 = vmul.f32 32.0, %v627
    %v629 = vsub.f32 1.0, %v628
    %v630 = vmul.f32 %v627, %v629
    %v631 = vadd.f32 %v627, %v630
    %vm632 = vweird.f32 %v627
    %v633 = vsel %vm632, %v627, %v631
    %v634 = vmul.f32 %v623, %v633
    %v635 = vmul.f32 %v626, %v633
    %v636 = vsub.f32 %v617, %v634
    %v637 = vsub.f32 %v619, %v635
    %v638 = vmul.f32 %v636, %v636
    %v639 = vmul.f32 %v637, %v637
    %v640 = vsel %vm195, %v638, 0.0
    %641 = vadd.xlane.f32.xlu0 %v640
    %v642 = vpop.xlane.xlu0 %641
    %v643 = vsel %vm195, %v639, 0.0
    %644 = vadd.xlane.f32.xlu0 %v643
    %v645 = vpop.xlane.xlu0 %644
    %v646 = vmul.f32 %v642, %v633
    %v647 = vmul.f32 %v645, %v633
    %v648 = vadd.f32 %v646, 1e-05
    %v649 = vadd.f32 %v647, 1e-05
    %v650 = vrsqrt.pop %v648
    %v651 = vmul.f32 %v650, %v648
    %v652 = vmul.f32 %v651, %v650
    %v653 = vmul.f32 0.5, %v652
    %v654 = vsub.f32 1.5, %v653
    %v655 = vmul.f32 %v650, %v654
    %vm656 = vweird.f32 %v648
    %vm657 = vweird.f32 %v650
    %vm658 = vmor %vm656, %vm657
    %v659 = vsel %vm658, %v650, %v655
    %v660 = vrsqrt.pop %v649
    %v661 = vmul.f32 %v660, %v649
    %v662 = vmul.f32 %v661, %v660
    %v663 = vmul.f32 0.5, %v662
    %v664 = vsub.f32 1.5, %v663
    %v665 = vmul.f32 %v660, %v664
    %vm666 = vweird.f32 %v649
    %vm667 = vweird.f32 %v660
    %vm668 = vmor %vm666, %vm667
    %v669 = vsel %vm668, %v660, %v665
    %v670 = vmul.f32 %v636, %v659
    %v671 = vmul.f32 %v637, %v669
    %v672 = vperm.slane %v150, 0
    %v673 = vmul.f32 %v670, %v672
    %v674 = vmul.f32 %v671, %v672
    %v675 = vperm.slane %v151, 0
    %v676 = vadd.f32 %v673, %v675
    %v677 = vadd.f32 %v674, %v675
    %v678 = vpack.c.bf16 %v677, %v676
    %v679 = vld [vmem:[#allocation10] sm:$0xf]
    %v680 = vld [vmem:[#allocation10 + $0x4] sm:$0xf]
    %v681 = vld [vmem:[#allocation10 + $0x8] sm:$0xf]
    %v682 = vld [vmem:[#allocation10 + $0xc] sm:$0xf]
    %v683 = vperm.slane %v155, 0
    %v688 = vunpack.c.l.b16 %v679
    %v689 = vunpack.c.l.b16 %v680
    %v690 = vunpack.c.l.b16 %v681
    %v691 = vunpack.c.l.b16 %v682
    %v692 = vpack.c.b16 %v689, %v688
    %v693 = vpack.c.b16 %v691, %v690
    %v697 = vsel %vm195, %v678, 0
    %699 = vmatpush.bf16.msra.mxu0 0
    %700 = vmatpush.bf16.msra.mxu0 0
    %701 = vmatpush.bf16.msra.mxu0 0
    %702 = vmatpush.bf16.msra.mxu0 0
    %703 = vmatpush.bf16.msra.mxu0 0
    %704 = vmatpush.bf16.msra.mxu0 0
    %705 = vmatpush.bf16.msra.mxu0 %v693
    %706 = vmatpush.bf16.msra.mxu0 %v692
    %707 = vmatmul.bf16.gmra.mxu0 %v697
    %v708 = vpop.f32.mrf.mxu0
    %v709 = vadd.f32 %v683, %v708
    %v710 = vpop.f32.mrf.mxu0
    %v711 = vadd.f32 %v683, %v710
    %712 = vdwg.mxu0
    %v713 = vmax.f32 %v709, 0.0
    %v714 = vmax.f32 %v711, 0.0
    %v715 = vpack.c.bf16 %v714, %v713
    %v716 = vld [vmem:[%s7] sm:$0xf]
    %v717 = vld [vmem:[%s7 + $0x4] sm:$0xf]
    %v718 = vld [vmem:[%s7 + $0x8] sm:$0xf]
    %v719 = vld [vmem:[%s7 + $0xc] sm:$0xf]
    %v720 = vld [vmem:[%s7 + $0x10] sm:$0xf]
    %v721 = vld [vmem:[%s7 + $0x14] sm:$0xf]
    %v722 = vld [vmem:[%s7 + $0x18] sm:$0xf]
    %v723 = vld [vmem:[%s7 + $0x1c] sm:$0xf]
    %v724 = vperm.slane %v154, 0
    %v733 = vunpack.c.l.b16 %v716
    %v734 = vunpack.c.l.b16 %v717
    %v735 = vunpack.c.l.b16 %v718
    %v736 = vunpack.c.l.b16 %v719
    %v737 = vunpack.c.l.b16 %v720
    %v738 = vunpack.c.l.b16 %v721
    %v739 = vunpack.c.l.b16 %v722
    %v740 = vunpack.c.l.b16 %v723
    %v741 = vpack.c.b16 %v734, %v733
    %v742 = vpack.c.b16 %v736, %v735
    %v743 = vpack.c.b16 %v738, %v737
    %v744 = vpack.c.b16 %v740, %v739
    %vm749 = vcmask 523264
    %v751 = vsel %vm749, %v715, 0
    %753 = vmatpush.bf16.msra.mxu0 0
    %754 = vmatpush.bf16.msra.mxu0 0
    %755 = vmatpush.bf16.msra.mxu0 0
    %756 = vmatpush.bf16.msra.mxu0 0
    %757 = vmatpush.bf16.msra.mxu0 %v744
    %758 = vmatpush.bf16.msra.mxu0 %v743
    %759 = vmatpush.bf16.msra.mxu0 %v742
    %760 = vmatpush.bf16.msra.mxu0 %v741
    %761 = vmatmul.bf16.gmra.mxu0 %v751
    %v762 = vpop.f32.mrf.mxu0
    %v763 = vadd.f32 %v724, %v762
    %v764 = vpop.f32.mrf.mxu0
    %v765 = vadd.f32 %v724, %v764
    %766 = vdwg.mxu0
    %v767 = vadd.f32 %v676, %v763
    %v768 = vadd.f32 %v677, %v765
    %v769 = vsel %vm195, %v767, 0.0
    %770 = vadd.xlane.f32.xlu0 %v769
    %v771 = vpop.xlane.xlu0 %770
    %v772 = vsel %vm195, %v768, 0.0
    %773 = vadd.xlane.f32.xlu0 %v772
    %v774 = vpop.xlane.xlu0 %773
    %v775 = vmul.f32 %v771, %v633
    %v776 = vmul.f32 %v774, %v633
    %v777 = vsub.f32 %v767, %v775
    %v778 = vsub.f32 %v768, %v776
    %v779 = vmul.f32 %v777, %v777
    %v780 = vmul.f32 %v778, %v778
    %v781 = vsel %vm195, %v779, 0.0
    %782 = vadd.xlane.f32.xlu0 %v781
    %v783 = vpop.xlane.xlu0 %782
    %v784 = vsel %vm195, %v780, 0.0
    %785 = vadd.xlane.f32.xlu0 %v784
    %v786 = vpop.xlane.xlu0 %785
    %v787 = vmul.f32 %v783, %v633
    %v788 = vmul.f32 %v786, %v633
    %v789 = vadd.f32 %v787, 1e-05
    %v790 = vadd.f32 %v788, 1e-05
    %v791 = vrsqrt.pop %v789
    %v792 = vmul.f32 %v791, %v789
    %v793 = vmul.f32 %v792, %v791
    %v794 = vmul.f32 0.5, %v793
    %v795 = vsub.f32 1.5, %v794
    %v796 = vmul.f32 %v791, %v795
    %vm797 = vweird.f32 %v789
    %vm798 = vweird.f32 %v791
    %vm799 = vmor %vm797, %vm798
    %v800 = vsel %vm799, %v791, %v796
    %v801 = vrsqrt.pop %v790
    %v802 = vmul.f32 %v801, %v790
    %v803 = vmul.f32 %v802, %v801
    %v804 = vmul.f32 0.5, %v803
    %v805 = vsub.f32 1.5, %v804
    %v806 = vmul.f32 %v801, %v805
    %vm807 = vweird.f32 %v790
    %vm808 = vweird.f32 %v801
    %vm809 = vmor %vm807, %vm808
    %v810 = vsel %vm809, %v801, %v806
    %v811 = vmul.f32 %v777, %v800
    %v812 = vmul.f32 %v778, %v810
    %v813 = vperm.slane %v152, 0
    %v814 = vmul.f32 %v811, %v813
    %v815 = vmul.f32 %v812, %v813
    %v816 = vperm.slane %v153, 0
    %v817 = vadd.f32 %v814, %v816
    %v818 = vadd.f32 %v815, %v816
    %819 = vst.msk [vmem:[#allocation14] sm:$0xff] %vm195, %v817
    %820 = vst.msk [vmem:[#allocation14 + $0x8] sm:$0xff] %vm195, %v818
    // Predicated region
    $region70: #{tpu_custom_call.1} parent=1 // pred_check
      _
    $region71: #{tpu_custom_call.1} parent=1 // pred_check_branch
      %822 = sbr.rel (0) target = $region73
    $region72: #{tpu_custom_call.1} parent=1 // pred_region
      %824 = vsyncadd [#allocation4], 0
      %s825 = sshll.u32 [#allocation14], 4
      %s826 = int_to_ptr.vmem [resolvable:$true] %s825
      %s827 = sshll.u32 %s10, 4
      %s828 = int_to_ptr.hbm [resolvable:$true] %s827
      %833 = dma.vmem_to_hbm [thread:$0]  %s826, 256, %s828, [#allocation4], 128, 128, 8
    $region73: #{tpu_custom_call.1} parent=1 // pred_fallthru
      _
    // Predicated region
    $region74: #{tpu_custom_call.1} parent=1 // pred_check
      _
    $region75: #{tpu_custom_call.1} parent=1 // pred_check_branch
      %835 = sbr.rel (0) target = $region77
    $region76: #{tpu_custom_call.1} parent=1 // pred_region
      %837 = dma.done [#allocation4], 256
    $region77: #{tpu_custom_call.1} parent=1 // pred_fallthru
      _
    %838 = vsyncpa [#allocation3], 1
    %839 = vsyncpa [#allocation6], 1
    %840 = vsyncpa [#allocation9], 1
    %841 = vsyncpa [#allocation12], 1
    %842 = vsyncpa [#allocation4], 1

// kernel: tpu_custom_call.1
$region0: #{tpu_custom_call.1}
  #allocation0 [shape = 'u32[]', space=smem, size = 0x4, offset = 0x4, fixed_abs, tag = 'smem constant byte address 0x4 - core index']
  #allocation1 [shape = 'u32[72,128]{1,0:T(1,128)}', space=vmem, size = 0x9000, scoped, tag = 'internal scratch']
  %s0 = inlined_call_operand.vmem [shape: f32[2,8,32], index: 0, kind: input, shape index: {}]
  %s1 = inlined_call_operand.vmem [shape: f32[2,16,32], index: 1, kind: input, shape index: {}]
  %s2 = inlined_call_operand.hbm [shape: f32[2,8,32], index: 2, kind: input, shape index: {}]
  %s3 = inlined_call_operand.hbm [shape: f32[2,16,32], index: 3, kind: input, shape index: {}]
  %s4 = inlined_call_operand.hbm [shape: bf16[32,96], index: 4, kind: input, shape index: {}]
  %s5 = inlined_call_operand.hbm [shape: bf16[32,32], index: 5, kind: input, shape index: {}]
  %s6 = inlined_call_operand.hbm [shape: bf16[32,64], index: 6, kind: input, shape index: {}]
  %s7 = inlined_call_operand.vmem [shape: bf16[64,32], index: 7, kind: input, shape index: {}]
  %s8 = inlined_call_operand.hbm [shape: f32[10,64], index: 8, kind: input, shape index: {}]
  %s9 = inlined_call_operand.hbm [shape: f32[2,32,32], index: 9, kind: input, shape index: {}]
  %s10 = inlined_call_operand.hbm [shape: f32[2,8,32], index: 10, kind: output, shape index: {}]
  %s11 = sld [smem:[#allocation0]]
  $region78: #{tpu_custom_call.1} parent=0
    _
  %s13 = ssub.s32 1, %s11
  %s14 = scalar_select 0, %s13, %s11
  $region1: #{tpu_custom_call.1} parent=0
    #allocation2 [shape = 'u8[8192]{0}', space=vmem, size = 0x2000, scoped, tag = 'input window, operand 2, single buffered']
    #allocation3 [shape = 's32[1]{0}', space=sflag, size = 0x4, scoped, tag = 'scoped memory for tpu_custom_call.1']
    #allocation4 [shape = 's32[1]{0}', space=sflag, size = 0x4, scoped, tag = 'scoped memory for tpu_custom_call.1']
    #allocation5 [shape = 'u8[16384]{0}', space=vmem, size = 0x4000, scoped, tag = 'input window, operand 3, single buffered']
    #allocation6 [shape = 's32[1]{0}', space=sflag, size = 0x4, scoped, tag = 'scoped memory for tpu_custom_call.1']
    #allocation7 [shape = 'u8[8192]{0}', space=vmem, size = 0x2000, scoped, tag = 'input window, operand 4, single buffered']
    #allocation8 [shape = 'u8[8192]{0}', space=vmem, size = 0x2000, scoped, tag = 'input window, operand 5, single buffered']
    #allocation9 [shape = 's32[1]{0}', space=sflag, size = 0x4, scoped, tag = 'scoped memory for tpu_custom_call.1']
    #allocation10 [shape = 'u8[8192]{0}', space=vmem, size = 0x2000, scoped, tag = 'input window, operand 6, single buffered']
    #allocation11 [shape = 'u8[8192]{0}', space=vmem, size = 0x2000, scoped, tag = 'input window, operand 8, single buffered']
    #allocation12 [shape = 's32[1]{0}', space=sflag, size = 0x4, scoped, tag = 'scoped memory for tpu_custom_call.1']
    #allocation13 [shape = 'u8[32768]{0}', space=vmem, size = 0x8000, scoped, tag = 'input window, operand 9, single buffered']
    #allocation14 [shape = 'u8[8192]{0}', space=vmem, size = 0x2000, scoped, tag = 'output window, operand 0, single buffered']
    %15 = vsyncpa [#allocation3], 0
    %16 = vsyncpa [#allocation6], 0
    %17 = vsyncpa [#allocation9], 0
    %18 = vsyncpa [#allocation12], 0
    %19 = vsyncpa [#allocation4], 0
    // Predicated region
    $region2: #{tpu_custom_call.1} parent=1 // pred_check
      _
    $region3: #{tpu_custom_call.1} parent=1 // pred_check_branch
      %21 = sbr.rel (0) target = $region5
    $region4: #{tpu_custom_call.1} parent=1 // pred_region
      _
    $region5: #{tpu_custom_call.1} parent=1 // pred_fallthru
      _
    // Predicated region
    $region6: #{tpu_custom_call.1} parent=1 // pred_check
      _
    $region7: #{tpu_custom_call.1} parent=1 // pred_check_branch
      %23 = sbr.rel (0) target = $region9
    $region8: #{tpu_custom_call.1} parent=1 // pred_region
      _
    $region9: #{tpu_custom_call.1} parent=1 // pred_fallthru
      _
    // Predicated region
    $region10: #{tpu_custom_call.1} parent=1 // pred_check
      _
    $region11: #{tpu_custom_call.1} parent=1 // pred_check_branch
      %25 = sbr.rel (0) target = $region13
    $region12: #{tpu_custom_call.1} parent=1 // pred_region
      %27 = vsyncadd [#allocation3], 0
      %s28 = sshll.u32 %s2, 4
      %s29 = int_to_ptr.hbm [resolvable:$true] %s28
      %s30 = sshll.u32 [#allocation2], 4
      %s31 = int_to_ptr.vmem [resolvable:$true] %s30
      %36 = dma.hbm_to_vmem [thread:$0]  %s29, 256, %s31, [#allocation3], 128, 128, 8
    $region13: #{tpu_custom_call.1} parent=1 // pred_fallthru
      _
    // Predicated region
    $region14: #{tpu_custom_call.1} parent=1 // pred_check
      _
    $region15: #{tpu_custom_call.1} parent=1 // pred_check_branch
      %38 = sbr.rel (0) target = $region17
    $region16: #{tpu_custom_call.1} parent=1 // pred_region
      %40 = vsyncadd [#allocation6], 0
      %s41 = sshll.u32 %s3, 4
      %s42 = int_to_ptr.hbm [resolvable:$true] %s41
      %s43 = sshll.u32 [#allocation5], 4
      %s44 = int_to_ptr.vmem [resolvable:$true] %s43
      %49 = dma.hbm_to_vmem [thread:$0]  %s42, 512, %s44, [#allocation6], 128, 128, 8
    $region17: #{tpu_custom_call.1} parent=1 // pred_fallthru
      _
    // Predicated region
    $region18: #{tpu_custom_call.1} parent=1 // pred_check
      _
    $region19: #{tpu_custom_call.1} parent=1 // pred_check_branch
      %51 = sbr.rel (0) target = $region21
    $region20: #{tpu_custom_call.1} parent=1 // pred_region
      %53 = vsyncadd [#allocation6], 0
      %s54 = sshll.u32 %s4, 4
      %s55 = int_to_ptr.hbm [resolvable:$true] %s54
      %s56 = sshll.u32 [#allocation7], 4
      %s57 = int_to_ptr.vmem [resolvable:$true] %s56
      %62 = dma.hbm_to_vmem [thread:$0]  %s55, 256, %s57, [#allocation6], 64, 64, 4
    $region21: #{tpu_custom_call.1} parent=1 // pred_fallthru
      _
    // Predicated region
    $region22: #{tpu_custom_call.1} parent=1 // pred_check
      _
    $region23: #{tpu_custom_call.1} parent=1 // pred_check_branch
      %64 = sbr.rel (0) target = $region25
    $region24: #{tpu_custom_call.1} parent=1 // pred_region
      %66 = vsyncadd [#allocation9], 0
      %s67 = sshll.u32 %s5, 4
      %s68 = int_to_ptr.hbm [resolvable:$true] %s67
      %s69 = sshll.u32 [#allocation8], 4
      %s70 = int_to_ptr.vmem [resolvable:$true] %s69
      %75 = dma.hbm_to_vmem [thread:$0]  %s68, 256, %s70, [#allocation9], 64, 64, 4
    $region25: #{tpu_custom_call.1} parent=1 // pred_fallthru
      _
    // Predicated region
    $region26: #{tpu_custom_call.1} parent=1 // pred_check
      _
    $region27: #{tpu_custom_call.1} parent=1 // pred_check_branch
      %77 = sbr.rel (0) target = $region29
    $region28: #{tpu_custom_call.1} parent=1 // pred_region
      %79 = vsyncadd [#allocation9], 0
      %s80 = sshll.u32 %s6, 4
      %s81 = int_to_ptr.hbm [resolvable:$true] %s80
      %s82 = sshll.u32 [#allocation10], 4
      %s83 = int_to_ptr.vmem [resolvable:$true] %s82
      %88 = dma.hbm_to_vmem [thread:$0]  %s81, 256, %s83, [#allocation9], 64, 64, 4
    $region29: #{tpu_custom_call.1} parent=1 // pred_fallthru
      _
    // Predicated region
    $region30: #{tpu_custom_call.1} parent=1 // pred_check
      _
    $region31: #{tpu_custom_call.1} parent=1 // pred_check_branch
      %90 = sbr.rel (0) target = $region33
    $region32: #{tpu_custom_call.1} parent=1 // pred_region
      _
    $region33: #{tpu_custom_call.1} parent=1 // pred_fallthru
      _
    // Predicated region
    $region34: #{tpu_custom_call.1} parent=1 // pred_check
      _
    $region35: #{tpu_custom_call.1} parent=1 // pred_check_branch
      %92 = sbr.rel (0) target = $region37
    $region36: #{tpu_custom_call.1} parent=1 // pred_region
      %94 = vsyncadd [#allocation12], 0
      %s95 = sshll.u32 %s8, 4
      %s96 = int_to_ptr.hbm [resolvable:$true] %s95
      %s97 = sshll.u32 [#allocation11], 4
      %s98 = int_to_ptr.vmem [resolvable:$true] %s97
      %103 = dma.hbm_to_vmem [thread:$0]  %s96, 256, %s98, [#allocation12], 128, 128, 8
    $region37: #{tpu_custom_call.1} parent=1 // pred_fallthru
      _
    // Predicated region
    $region38: #{tpu_custom_call.1} parent=1 // pred_check
      _
    $region39: #{tpu_custom_call.1} parent=1 // pred_check_branch
      %105 = sbr.rel (0) target = $region41
    $region40: #{tpu_custom_call.1} parent=1 // pred_region
      %107 = vsyncadd [#allocation12], 0
      %s108 = sshll.u32 %s9, 4
      %s109 = int_to_ptr.hbm [resolvable:$true] %s108
      %s110 = sshll.u32 [#allocation13], 4
      %s111 = int_to_ptr.vmem [resolvable:$true] %s110
      %116 = dma.hbm_to_vmem [thread:$0]  %s109, 1024, %s111, [#allocation12], 128, 128, 8
    $region41: #{tpu_custom_call.1} parent=1 // pred_fallthru
      _
    // Predicated region
    $region42: #{tpu_custom_call.1} parent=1 // pred_check
      _
    $region43: #{tpu_custom_call.1} parent=1 // pred_check_branch
      %118 = sbr.rel (0) target = $region45
    $region44: #{tpu_custom_call.1} parent=1 // pred_region
      %120 = dma.done [#allocation3], 256
    $region45: #{tpu_custom_call.1} parent=1 // pred_fallthru
      _
    // Predicated region
    $region46: #{tpu_custom_call.1} parent=1 // pred_check
      _
    $region47: #{tpu_custom_call.1} parent=1 // pred_check_branch
      %122 = sbr.rel (0) target = $region49
    $region48: #{tpu_custom_call.1} parent=1 // pred_region
      %124 = dma.done [#allocation6], 512
    $region49: #{tpu_custom_call.1} parent=1 // pred_fallthru
      _
    // Predicated region
    $region50: #{tpu_custom_call.1} parent=1 // pred_check
      _
    $region51: #{tpu_custom_call.1} parent=1 // pred_check_branch
      %126 = sbr.rel (0) target = $region53
    $region52: #{tpu_custom_call.1} parent=1 // pred_region
      %128 = dma.done [#allocation6], 256
    $region53: #{tpu_custom_call.1} parent=1 // pred_fallthru
      _
    // Predicated region
    $region54: #{tpu_custom_call.1} parent=1 // pred_check
      _
    $region55: #{tpu_custom_call.1} parent=1 // pred_check_branch
      %130 = sbr.rel (0) target = $region57
    $region56: #{tpu_custom_call.1} parent=1 // pred_region
      %132 = dma.done [#allocation9], 256
    $region57: #{tpu_custom_call.1} parent=1 // pred_fallthru
      _
    // Predicated region
    $region58: #{tpu_custom_call.1} parent=1 // pred_check
      _
    $region59: #{tpu_custom_call.1} parent=1 // pred_check_branch
      %134 = sbr.rel (0) target = $region61
    $region60: #{tpu_custom_call.1} parent=1 // pred_region
      %136 = dma.done [#allocation9], 256
    $region61: #{tpu_custom_call.1} parent=1 // pred_fallthru
      _
    // Predicated region
    $region62: #{tpu_custom_call.1} parent=1 // pred_check
      _
    $region63: #{tpu_custom_call.1} parent=1 // pred_check_branch
      %138 = sbr.rel (0) target = $region65
    $region64: #{tpu_custom_call.1} parent=1 // pred_region
      %140 = dma.done [#allocation12], 256
    $region65: #{tpu_custom_call.1} parent=1 // pred_fallthru
      _
    // Predicated region
    $region66: #{tpu_custom_call.1} parent=1 // pred_check
      _
    $region67: #{tpu_custom_call.1} parent=1 // pred_check_branch
      %142 = sbr.rel (0) target = $region69
    $region68: #{tpu_custom_call.1} parent=1 // pred_region
      %144 = dma.done [#allocation12], 1024
    $region69: #{tpu_custom_call.1} parent=1 // pred_fallthru
      _
    %v146 = vld [vmem:[#allocation11] sm:$0x1]
    %v147 = vld [vmem:[#allocation11 + $0x1] sm:$0x1]
    %v148 = vld [vmem:[#allocation11 + $0x2] sm:$0x1]
    %v149 = vld [vmem:[#allocation11 + $0x3] sm:$0x1]
    %v150 = vld [vmem:[#allocation11 + $0x4] sm:$0x1]
    %v151 = vld [vmem:[#allocation11 + $0x5] sm:$0x1]
    %v152 = vld [vmem:[#allocation11 + $0x6] sm:$0x1]
    %v153 = vld [vmem:[#allocation11 + $0x7] sm:$0x1]
    %v154 = vld [vmem:[#allocation11 + $0x8] sm:$0x1]
    %v155 = vld [vmem:[#allocation11 + $0x9] sm:$0x1]
    %v156 = vld [vmem:[%s0] sm:$0xff]
    %v157 = vld [vmem:[%s0 + $0x8] sm:$0xff]
    %v158 = vld [vmem:[#allocation2] sm:$0xff]
    %v159 = vld [vmem:[#allocation2 + $0x8] sm:$0xff]
    %v160 = vadd.f32 %v156, %v158
    %v161 = vadd.f32 %v157, %v159
    %v162 = vld [vmem:[%s1] sm:$0xff]
    %v163 = vld [vmem:[%s1 + $0x8] sm:$0xff]
    %v164 = vld [vmem:[%s1 + $0x10] sm:$0xff]
    %v165 = vld [vmem:[%s1 + $0x18] sm:$0xff]
    %v166 = vld [vmem:[#allocation5] sm:$0xff]
    %v167 = vld [vmem:[#allocation5 + $0x8] sm:$0xff]
    %v168 = vld [vmem:[#allocation5 + $0x10] sm:$0xff]
    %v169 = vld [vmem:[#allocation5 + $0x18] sm:$0xff]
    %v170 = vadd.f32 %v162, %v166
    %v171 = vadd.f32 %v163, %v167
    %v172 = vadd.f32 %v164, %v168
    %v173 = vadd.f32 %v165, %v169
    %v174 = vpack.c.bf16 %v161, %v160
    %v175 = vpack.c.bf16 %v171, %v170
    %v176 = vpack.c.bf16 %v173, %v172
    %v177 = vpack.c.bf16 %v163, %v162
    %v178 = vpack.c.bf16 %v165, %v164
    %v179 = vld [vmem:[#allocation7] sm:$0xf]
    %v180 = vld [vmem:[#allocation7 + $0x4] sm:$0xf]
    %v181 = vld [vmem:[#allocation7 + $0x8] sm:$0xf]
    %v182 = vld [vmem:[#allocation7 + $0xc] sm:$0xf]
    %v187 = vunpack.c.l.b16 %v179
    %v188 = vunpack.c.l.b16 %v180
    %v189 = vunpack.c.l.b16 %v181
    %v190 = vunpack.c.l.b16 %v182
    %v191 = vpack.c.b16 %v188, %v187
    %v192 = vpack.c.b16 %v190, %v189
    %vm195 = vcmask 261120
    %v197 = vsel %vm195, %v174, 0
    %v200 = vsel %vm195, %v175, 0
    %v203 = vsel %vm195, %v176, 0
    %v206 = vsel %vm195, %v177, 0
    %v209 = vsel %vm195, %v178, 0
    %211 = vmatpush.bf16.msra.mxu0 0
    %212 = vmatpush.bf16.msra.mxu0 0
    %213 = vmatpush.bf16.msra.mxu0 0
    %214 = vmatpush.bf16.msra.mxu0 0
    %215 = vmatpush.bf16.msra.mxu0 0
    %216 = vmatpush.bf16.msra.mxu0 0
    %217 = vmatpush.bf16.msra.mxu0 %v192
    %218 = vmatpush.bf16.msra.mxu0 %v191
    %219 = vmatmul.bf16.gmra.mxu0 %v197
    %v220 = vpop.f32.mrf.mxu0
    %v221 = vadd.f32 0.0, %v220
    %v222 = vpop.f32.mrf.mxu0
    %v223 = vadd.f32 0.0, %v222
    %224 = vmatmul.bf16.gmra.mxu0 %v200
    %v225 = vpop.f32.mrf.mxu0
    %v226 = vadd.f32 0.0, %v225
    %v227 = vpop.f32.mrf.mxu0
    %v228 = vadd.f32 0.0, %v227
    %229 = vmatmul.bf16.gmra.mxu0 %v203
    %v230 = vpop.f32.mrf.mxu0
    %v231 = vadd.f32 0.0, %v230
    %v232 = vpop.f32.mrf.mxu0
    %v233 = vadd.f32 0.0, %v232
    %234 = vmatmul.bf16.gmra.mxu0 %v206
    %v235 = vpop.f32.mrf.mxu0
    %v236 = vadd.f32 0.0, %v235
    %v237 = vpop.f32.mrf.mxu0
    %v238 = vadd.f32 0.0, %v237
    %239 = vmatmul.bf16.gmra.mxu0 %v209
    %v240 = vpop.f32.mrf.mxu0
    %v241 = vadd.f32 0.0, %v240
    %v242 = vpop.f32.mrf.mxu0
    %v243 = vadd.f32 0.0, %v242
    %244 = vdwg.mxu0
    %v245 = vperm.slane %v146, 0
    %v246 = vadd.f32 %v221, %v245
    %v247 = vadd.f32 %v223, %v245
    %v248 = vperm.slane %v147, 0
    %250 = vrot.lane.b32.xlu0 %v248, 32
    %v251 = vpop.permute.xlu0 %250
    %v253 = vadd.f32 %v226, %v251
    %v254 = vadd.f32 %v228, %v251
    %v255 = vadd.f32 %v231, %v251
    %v256 = vadd.f32 %v233, %v251
    %v257 = vperm.slane %v148, 0
    %259 = vrot.lane.b32.xlu0 %v257, 64
    %v260 = vpop.permute.xlu0 %259
    %v262 = vadd.f32 %v236, %v260
    %v263 = vadd.f32 %v238, %v260
    %v264 = vadd.f32 %v241, %v260
    %v265 = vadd.f32 %v243, %v260
    %v266 = vld [vmem:[#allocation13] sm:$0xff]
    %v267 = vld [vmem:[#allocation13 + $0x8] sm:$0xff]
    %v268 = vld [vmem:[#allocation13 + $0x10] sm:$0xff]
    %v269 = vld [vmem:[#allocation13 + $0x18] sm:$0xff]
    %s270 = scalar_lea.vmem [#allocation13], 32
    %v271 = vld [vmem:[%s270] sm:$0xff]
    %v272 = vld [vmem:[%s270 + $0x8] sm:$0xff]
    %v273 = vld [vmem:[%s270 + $0x10] sm:$0xff]
    %v274 = vld [vmem:[%s270 + $0x18] sm:$0xff]
    %v275 = vmul.f32 %v246, %v266
    %v276 = vmul.f32 %v246, %v267
    %v277 = vmul.f32 %v246, %v268
    %v278 = vmul.f32 %v246, %v269
    %v279 = vmul.f32 %v247, %v266
    %v280 = vmul.f32 %v247, %v267
    %v281 = vmul.f32 %v247, %v268
    %v282 = vmul.f32 %v247, %v269
    %v283 = vpack.c.bf16 %v275, %v275
    %v284 = vpack.c.bf16 %v276, %v276
    %v285 = vpack.c.bf16 %v277, %v277
    %v286 = vpack.c.bf16 %v278, %v278
    %v287 = vpack.c.bf16 %v279, %v279
    %v288 = vpack.c.bf16 %v280, %v280
    %v289 = vpack.c.bf16 %v281, %v281
    %v290 = vpack.c.bf16 %v282, %v282
    %v291 = vpack.c.bf16 %v253, %v253
    %v292 = vpack.c.bf16 %v254, %v254
    %v293 = vpack.c.bf16 %v255, %v255
    %v294 = vpack.c.bf16 %v256, %v256
    %v299 = vunpack.c.l.b16 %v283
    %v300 = vunpack.c.l.b16 %v284
    %v301 = vunpack.c.l.b16 %v285
    %v302 = vunpack.c.l.b16 %v286
    %v303 = vpack.c.b16 %v300, %v299
    %v304 = vpack.c.b16 %v302, %v301
    %v307 = vunpack.c.l.b16 %v291
    %v308 = vunpack.c.l.b16 %v292
    %v309 = vpack.c.b16 %v308, %v307
    %310 = vrot.lane.b32.xlu0 %v309, 96
    %v311 = vpop.permute.xlu0 %310
    %v313 = vsel %vm195, %v303, 0
    %v316 = vsel %vm195, %v304, 0
    %v319 = vsel %vm195, %v311, 0
    %321 = vmatpush.bf16.xpose.msra.mxu0 0
    %322 = vmatpush.bf16.xpose.msra.mxu0 0
    %323 = vmatpush.bf16.xpose.msra.mxu0 0
    %324 = vmatpush.bf16.xpose.msra.mxu0 0
    %325 = vmatpush.bf16.xpose.msra.mxu0 0
    %326 = vmatpush.bf16.xpose.msra.mxu0 0
    %327 = vmatpush.bf16.xpose.msra.mxu0 0
    %328 = vmatpush.bf16.xpose.msra.mxu0 %v319
    %329 = vmatmul.bf16.gmra.mxu0 %v313
    %v330 = vpop.f32.mrf.mxu0
    %v331 = vadd.f32 0.0, %v330
    %v332 = vpop.f32.mrf.mxu0
    %v333 = vadd.f32 0.0, %v332
    %334 = vmatmul.bf16.gmra.mxu0 %v316
    %v335 = vpop.f32.mrf.mxu0
    %v336 = vadd.f32 0.0, %v335
    %v337 = vpop.f32.mrf.mxu0
    %v338 = vadd.f32 0.0, %v337
    %339 = vdwg.mxu0
    %v344 = vunpack.c.l.b16 %v287
    %v345 = vunpack.c.l.b16 %v288
    %v346 = vunpack.c.l.b16 %v289
    %v347 = vunpack.c.l.b16 %v290
    %v348 = vpack.c.b16 %v345, %v344
    %v349 = vpack.c.b16 %v347, %v346
    %v352 = vunpack.c.l.b16 %v293
    %v353 = vunpack.c.l.b16 %v294
    %v354 = vpack.c.b16 %v353, %v352
    %355 = vrot.lane.b32.xlu0 %v354, 96
    %v356 = vpop.permute.xlu0 %355
    %v358 = vsel %vm195, %v348, 0
    %v361 = vsel %vm195, %v349, 0
    %v364 = vsel %vm195, %v356, 0
    %366 = vmatpush.bf16.xpose.msra.mxu0 0
    %367 = vmatpush.bf16.xpose.msra.mxu0 0
    %368 = vmatpush.bf16.xpose.msra.mxu0 0
    %369 = vmatpush.bf16.xpose.msra.mxu0 0
    %370 = vmatpush.bf16.xpose.msra.mxu0 0
    %371 = vmatpush.bf16.xpose.msra.mxu0 0
    %372 = vmatpush.bf16.xpose.msra.mxu0 0
    %373 = vmatpush.bf16.xpose.msra.mxu0 %v364
    %374 = vmatmul.bf16.gmra.mxu0 %v358
    %v375 = vpop.f32.mrf.mxu0
    %v376 = vadd.f32 0.0, %v375
    %v377 = vpop.f32.mrf.mxu0
    %v378 = vadd.f32 0.0, %v377
    %379 = vmatmul.bf16.gmra.mxu0 %v361
    %v380 = vpop.f32.mrf.mxu0
    %v381 = vadd.f32 0.0, %v380
    %v382 = vpop.f32.mrf.mxu0
    %v383 = vadd.f32 0.0, %v382
    %384 = vdwg.mxu0
    %vm385 = vcmask 130048
    %v386 = vsel %vm385, %v331, -inf
    %387 = vmax.xlane.f32.xlu0 %v386
    %v388 = vpop.xlane.xlu0 %387
    %v389 = vsel %vm385, %v333, -inf
    %390 = vmax.xlane.f32.xlu0 %v389
    %v391 = vpop.xlane.xlu0 %390
    %v392 = vsel %vm385, %v336, -inf
    %393 = vmax.xlane.f32.xlu0 %v392
    %v394 = vpop.xlane.xlu0 %393
    %v395 = vsel %vm385, %v338, -inf
    %396 = vmax.xlane.f32.xlu0 %v395
    %v397 = vpop.xlane.xlu0 %396
    %v398 = vsel %vm385, %v376, -inf
    %399 = vmax.xlane.f32.xlu0 %v398
    %v400 = vpop.xlane.xlu0 %399
    %v401 = vsel %vm385, %v378, -inf
    %402 = vmax.xlane.f32.xlu0 %v401
    %v403 = vpop.xlane.xlu0 %402
    %v404 = vsel %vm385, %v381, -inf
    %405 = vmax.xlane.f32.xlu0 %v404
    %v406 = vpop.xlane.xlu0 %405
    %v407 = vsel %vm385, %v383, -inf
    %408 = vmax.xlane.f32.xlu0 %v407
    %v409 = vpop.xlane.xlu0 %408
    %v410 = vsub.f32 %v331, %v388
    %v411 = vsub.f32 %v333, %v391
    %v412 = vsub.f32 %v336, %v394
    %v413 = vsub.f32 %v338, %v397
    %v414 = vsub.f32 %v376, %v400
    %v415 = vsub.f32 %v378, %v403
    %v416 = vsub.f32 %v381, %v406
    %v417 = vsub.f32 %v383, %v409
    %v418 = vmul.f32 %v410, 1.442695
    %v419 = vpow.pop %v418
    %v420 = vmul.f32 %v411, 1.442695
    %v421 = vpow.pop %v420
    %v422 = vmul.f32 %v412, 1.442695
    %v423 = vpow.pop %v422
    %v424 = vmul.f32 %v413, 1.442695
    %v425 = vpow.pop %v424
    %v426 = vmul.f32 %v414, 1.442695
    %v427 = vpow.pop %v426
    %v428 = vmul.f32 %v415, 1.442695
    %v429 = vpow.pop %v428
    %v430 = vmul.f32 %v416, 1.442695
    %v431 = vpow.pop %v430
    %v432 = vmul.f32 %v417, 1.442695
    %v433 = vpow.pop %v432
    %v434 = vsel %vm385, %v419, 0.0
    %435 = vadd.xlane.f32.xlu0 %v434
    %v436 = vpop.xlane.xlu0 %435
    %v437 = vsel %vm385, %v421, 0.0
    %438 = vadd.xlane.f32.xlu0 %v437
    %v439 = vpop.xlane.xlu0 %438
    %v440 = vsel %vm385, %v423, 0.0
    %441 = vadd.xlane.f32.xlu0 %v440
    %v442 = vpop.xlane.xlu0 %441
    %v443 = vsel %vm385, %v425, 0.0
    %444 = vadd.xlane.f32.xlu0 %v443
    %v445 = vpop.xlane.xlu0 %444
    %v446 = vsel %vm385, %v427, 0.0
    %447 = vadd.xlane.f32.xlu0 %v446
    %v448 = vpop.xlane.xlu0 %447
    %v449 = vsel %vm385, %v429, 0.0
    %450 = vadd.xlane.f32.xlu0 %v449
    %v451 = vpop.xlane.xlu0 %450
    %v452 = vsel %vm385, %v431, 0.0
    %453 = vadd.xlane.f32.xlu0 %v452
    %v454 = vpop.xlane.xlu0 %453
    %v455 = vsel %vm385, %v433, 0.0
    %456 = vadd.xlane.f32.xlu0 %v455
    %v457 = vpop.xlane.xlu0 %456
    %v458 = vrcp.pop %v436
    %v459 = vrcp.pop %v439
    %v460 = vrcp.pop %v442
    %v461 = vrcp.pop %v445
    %v462 = vrcp.pop %v448
    %v463 = vrcp.pop %v451
    %v464 = vrcp.pop %v454
    %v465 = vrcp.pop %v457
    %v466 = vmul.f32 %v419, %v458
    %v467 = vmul.f32 %v421, %v459
    %v468 = vmul.f32 %v423, %v460
    %v469 = vmul.f32 %v425, %v461
    %v470 = vmul.f32 %v427, %v462
    %v471 = vmul.f32 %v429, %v463
    %v472 = vmul.f32 %v431, %v464
    %v473 = vmul.f32 %v433, %v465
    %v474 = vpack.c.bf16 %v466, %v466
    %v475 = vpack.c.bf16 %v467, %v467
    %v476 = vpack.c.bf16 %v468, %v468
    %v477 = vpack.c.bf16 %v469, %v469
    %v478 = vpack.c.bf16 %v470, %v470
    %v479 = vpack.c.bf16 %v471, %v471
    %v480 = vpack.c.bf16 %v472, %v472
    %v481 = vpack.c.bf16 %v473, %v473
    %v482 = vpack.c.bf16 %v262, %v262
    %v483 = vpack.c.bf16 %v263, %v263
    %v484 = vpack.c.bf16 %v264, %v264
    %v485 = vpack.c.bf16 %v265, %v265
    %v490 = vunpack.c.l.b16 %v474
    %v491 = vunpack.c.l.b16 %v475
    %v492 = vunpack.c.l.b16 %v476
    %v493 = vunpack.c.l.b16 %v477
    %v494 = vpack.c.b16 %v491, %v490
    %v495 = vpack.c.b16 %v493, %v492
    %v498 = vunpack.c.l.b16 %v482
    %v499 = vunpack.c.l.b16 %v483
    %v500 = vpack.c.b16 %v499, %v498
    %501 = vrot.lane.b32.xlu0 %v500, 64
    %v502 = vpop.permute.xlu0 %501
    %v505 = vsel %vm385, %v494, 0
    %v508 = vsel %vm385, %v495, 0
    %510 = vmatpush.bf16.msra.mxu0 0
    %511 = vmatpush.bf16.msra.mxu0 0
    %512 = vmatpush.bf16.msra.mxu0 0
    %513 = vmatpush.bf16.msra.mxu0 0
    %514 = vmatpush.bf16.msra.mxu0 0
    %515 = vmatpush.bf16.msra.mxu0 0
    %516 = vmatpush.bf16.msra.mxu0 0
    %517 = vmatpush.bf16.msra.mxu0 %v502
    %518 = vmatmul.bf16.gmra.mxu0 %v505
    %v519 = vpop.f32.mrf.mxu0
    %v520 = vadd.f32 0.0, %v519
    %v521 = vpop.f32.mrf.mxu0
    %v522 = vadd.f32 0.0, %v521
    %523 = vmatmul.bf16.gmra.mxu0 %v508
    %v524 = vpop.f32.mrf.mxu0
    %v525 = vadd.f32 0.0, %v524
    %v526 = vpop.f32.mrf.mxu0
    %v527 = vadd.f32 0.0, %v526
    %528 = vdwg.mxu0
    %v533 = vunpack.c.l.b16 %v478
    %v534 = vunpack.c.l.b16 %v479
    %v535 = vunpack.c.l.b16 %v480
    %v536 = vunpack.c.l.b16 %v481
    %v537 = vpack.c.b16 %v534, %v533
    %v538 = vpack.c.b16 %v536, %v535
    %v541 = vunpack.c.l.b16 %v484
    %v542 = vunpack.c.l.b16 %v485
    %v543 = vpack.c.b16 %v542, %v541
    %544 = vrot.lane.b32.xlu0 %v543, 64
    %v545 = vpop.permute.xlu0 %544
    %v548 = vsel %vm385, %v537, 0
    %v551 = vsel %vm385, %v538, 0
    %553 = vmatpush.bf16.msra.mxu0 0
    %554 = vmatpush.bf16.msra.mxu0 0
    %555 = vmatpush.bf16.msra.mxu0 0
    %556 = vmatpush.bf16.msra.mxu0 0
    %557 = vmatpush.bf16.msra.mxu0 0
    %558 = vmatpush.bf16.msra.mxu0 0
    %559 = vmatpush.bf16.msra.mxu0 0
    %560 = vmatpush.bf16.msra.mxu0 %v545
    %561 = vmatmul.bf16.gmra.mxu0 %v548
    %v562 = vpop.f32.mrf.mxu0
    %v563 = vadd.f32 0.0, %v562
    %v564 = vpop.f32.mrf.mxu0
    %v565 = vadd.f32 0.0, %v564
    %566 = vmatmul.bf16.gmra.mxu0 %v551
    %v567 = vpop.f32.mrf.mxu0
    %v568 = vadd.f32 0.0, %v567
    %v569 = vpop.f32.mrf.mxu0
    %v570 = vadd.f32 0.0, %v569
    %571 = vdwg.mxu0
    %v572 = vmul.f32 %v520, %v271
    %v573 = vmul.f32 %v522, %v272
    %v574 = vmul.f32 %v525, %v273
    %v575 = vmul.f32 %v527, %v274
    %v576 = vmul.f32 %v563, %v271
    %v577 = vmul.f32 %v565, %v272
    %v578 = vmul.f32 %v568, %v273
    %v579 = vmul.f32 %v570, %v274
    %v580 = vadd.f32 %v572, %v573
    %v581 = vadd.f32 %v576, %v577
    %v582 = vadd.f32 %v580, %v574
    %v583 = vadd.f32 %v581, %v578
    %v584 = vadd.f32 %v582, %v575
    %v585 = vadd.f32 %v583, %v579
    %v586 = vpack.c.bf16 %v585, %v584
    %v587 = vld [vmem:[#allocation8] sm:$0xf]
    %v588 = vld [vmem:[#allocation8 + $0x4] sm:$0xf]
    %v589 = vld [vmem:[#allocation8 + $0x8] sm:$0xf]
    %v590 = vld [vmem:[#allocation8 + $0xc] sm:$0xf]
    %v591 = vperm.slane %v149, 0
    %v596 = vunpack.c.l.b16 %v587
    %v597 = vunpack.c.l.b16 %v588
    %v598 = vunpack.c.l.b16 %v589
    %v599 = vunpack.c.l.b16 %v590
    %v600 = vpack.c.b16 %v597, %v596
    %v601 = vpack.c.b16 %v599, %v598
    %v605 = vsel %vm195, %v586, 0
    %607 = vmatpush.bf16.msra.mxu0 0
    %608 = vmatpush.bf16.msra.mxu0 0
    %609 = vmatpush.bf16.msra.mxu0 0
    %610 = vmatpush.bf16.msra.mxu0 0
    %611 = vmatpush.bf16.msra.mxu0 0
    %612 = vmatpush.bf16.msra.mxu0 0
    %613 = vmatpush.bf16.msra.mxu0 %v601
    %614 = vmatpush.bf16.msra.mxu0 %v600
    %615 = vmatmul.bf16.gmra.mxu0 %v605
    %v616 = vpop.f32.mrf.mxu0
    %v617 = vadd.f32 %v591, %v616
    %v618 = vpop.f32.mrf.mxu0
    %v619 = vadd.f32 %v591, %v618
    %620 = vdwg.mxu0
    %v621 = vsel %vm195, %v617, 0.0
    %622 = vadd.xlane.f32.xlu0 %v621
    %v623 = vpop.xlane.xlu0 %622
    %v624 = vsel %vm195, %v619, 0.0
    %625 = vadd.xlane.f32.xlu0 %v624
    %v626 = vpop.xlane.xlu0 %625
    %v627 = vrcp.pop 32.0
    %v628 = vmul.f32 32.0, %v627
    %v629 = vsub.f32 1.0, %v628
    %v630 = vmul.f32 %v627, %v629
    %v631 = vadd.f32 %v627, %v630
    %vm632 = vweird.f32 %v627
    %v633 = vsel %vm632, %v627, %v631
    %v634 = vmul.f32 %v623, %v633
    %v635 = vmul.f32 %v626, %v633
    %v636 = vsub.f32 %v617, %v634
    %v637 = vsub.f32 %v619, %v635
    %v638 = vmul.f32 %v636, %v636
    %v639 = vmul.f32 %v637, %v637
    %v640 = vsel %vm195, %v638, 0.0
    %641 = vadd.xlane.f32.xlu0 %v640
    %v642 = vpop.xlane.xlu0 %641
    %v643 = vsel %vm195, %v639, 0.0
    %644 = vadd.xlane.f32.xlu0 %v643
    %v645 = vpop.xlane.xlu0 %644
    %v646 = vmul.f32 %v642, %v633
    %v647 = vmul.f32 %v645, %v633
    %v648 = vadd.f32 %v646, 1e-05
    %v649 = vadd.f32 %v647, 1e-05
    %v650 = vrsqrt.pop %v648
    %v651 = vmul.f32 %v650, %v648
    %v652 = vmul.f32 %v651, %v650
    %v653 = vmul.f32 0.5, %v652
    %v654 = vsub.f32 1.5, %v653
    %v655 = vmul.f32 %v650, %v654
    %vm656 = vweird.f32 %v648
    %vm657 = vweird.f32 %v650
    %vm658 = vmor %vm656, %vm657
    %v659 = vsel %vm658, %v650, %v655
    %v660 = vrsqrt.pop %v649
    %v661 = vmul.f32 %v660, %v649
    %v662 = vmul.f32 %v661, %v660
    %v663 = vmul.f32 0.5, %v662
    %v664 = vsub.f32 1.5, %v663
    %v665 = vmul.f32 %v660, %v664
    %vm666 = vweird.f32 %v649
    %vm667 = vweird.f32 %v660
    %vm668 = vmor %vm666, %vm667
    %v669 = vsel %vm668, %v660, %v665
    %v670 = vmul.f32 %v636, %v659
    %v671 = vmul.f32 %v637, %v669
    %v672 = vperm.slane %v150, 0
    %v673 = vmul.f32 %v670, %v672
    %v674 = vmul.f32 %v671, %v672
    %v675 = vperm.slane %v151, 0
    %v676 = vadd.f32 %v673, %v675
    %v677 = vadd.f32 %v674, %v675
    %v678 = vpack.c.bf16 %v677, %v676
    %v679 = vld [vmem:[#allocation10] sm:$0xf]
    %v680 = vld [vmem:[#allocation10 + $0x4] sm:$0xf]
    %v681 = vld [vmem:[#allocation10 + $0x8] sm:$0xf]
    %v682 = vld [vmem:[#allocation10 + $0xc] sm:$0xf]
    %v683 = vperm.slane %v155, 0
    %v688 = vunpack.c.l.b16 %v679
    %v689 = vunpack.c.l.b16 %v680
    %v690 = vunpack.c.l.b16 %v681
    %v691 = vunpack.c.l.b16 %v682
    %v692 = vpack.c.b16 %v689, %v688
    %v693 = vpack.c.b16 %v691, %v690
    %v697 = vsel %vm195, %v678, 0
    %699 = vmatpush.bf16.msra.mxu0 0
    %700 = vmatpush.bf16.msra.mxu0 0
    %701 = vmatpush.bf16.msra.mxu0 0
    %702 = vmatpush.bf16.msra.mxu0 0
    %703 = vmatpush.bf16.msra.mxu0 0
    %704 = vmatpush.bf16.msra.mxu0 0
    %705 = vmatpush.bf16.msra.mxu0 %v693
    %706 = vmatpush.bf16.msra.mxu0 %v692
    %707 = vmatmul.bf16.gmra.mxu0 %v697
    %v708 = vpop.f32.mrf.mxu0
    %v709 = vadd.f32 %v683, %v708
    %v710 = vpop.f32.mrf.mxu0
    %v711 = vadd.f32 %v683, %v710
    %712 = vdwg.mxu0
    %v713 = vmax.f32 %v709, 0.0
    %v714 = vmax.f32 %v711, 0.0
    %v715 = vpack.c.bf16 %v714, %v713
    %v716 = vld [vmem:[%s7] sm:$0xf]
    %v717 = vld [vmem:[%s7 + $0x4] sm:$0xf]
    %v718 = vld [vmem:[%s7 + $0x8] sm:$0xf]
    %v719 = vld [vmem:[%s7 + $0xc] sm:$0xf]
    %v720 = vld [vmem:[%s7 + $0x10] sm:$0xf]
    %v721 = vld [vmem:[%s7 + $0x14] sm:$0xf]
    %v722 = vld [vmem:[%s7 + $0x18] sm:$0xf]
    %v723 = vld [vmem:[%s7 + $0x1c] sm:$0xf]
    %v724 = vperm.slane %v154, 0
    %v733 = vunpack.c.l.b16 %v716
    %v734 = vunpack.c.l.b16 %v717
    %v735 = vunpack.c.l.b16 %v718
    %v736 = vunpack.c.l.b16 %v719
    %v737 = vunpack.c.l.b16 %v720
    %v738 = vunpack.c.l.b16 %v721
    %v739 = vunpack.c.l.b16 %v722
    %v740 = vunpack.c.l.b16 %v723
    %v741 = vpack.c.b16 %v734, %v733
    %v742 = vpack.c.b16 %v736, %v735
    %v743 = vpack.c.b16 %v738, %v737
    %v744 = vpack.c.b16 %v740, %v739
    %vm749 = vcmask 523264
    %v751 = vsel %vm749, %v715, 0
    %753 = vmatpush.bf16.msra.mxu0 0
    %754 = vmatpush.bf16.msra.mxu0 0
    %755 = vmatpush.bf16.msra.mxu0 0
    %756 = vmatpush.bf16.msra.mxu0 0
    %757 = vmatpush.bf16.msra.mxu0 %v744
    %758 = vmatpush.bf16.msra.mxu0 %v743
    %759 = vmatpush.bf16.msra.mxu0 %v742
    %760 = vmatpush.bf16.msra.mxu0 %v741
    %761 = vmatmul.bf16.gmra.mxu0 %v751
    %v762 = vpop.f32.mrf.mxu0
    %v763 = vadd.f32 %v724, %v762
    %v764 = vpop.f32.mrf.mxu0
    %v765 = vadd.f32 %v724, %v764
    %766 = vdwg.mxu0
    %v767 = vadd.f32 %v676, %v763
    %v768 = vadd.f32 %v677, %v765
    %v769 = vsel %vm195, %v767, 0.0
    %770 = vadd.xlane.f32.xlu0 %v769
    %v771 = vpop.xlane.xlu0 %770
    %v772 = vsel %vm195, %v768, 0.0
    %773 = vadd.xlane.f32.xlu0 %v772
    %v774 = vpop.xlane.xlu0 %773
    %v775 = vmul.f32 %v771, %v633
    %v776 = vmul.f32 %v774, %v633
    %v777 = vsub.f32 %v767, %v775
    %v778 = vsub.f32 %v768, %v776
    %v779 = vmul.f32 %v777, %v777
    %v780 = vmul.f32 %v778, %v778
    %v781 = vsel %vm195, %v779, 0.0
    %782 = vadd.xlane.f32.xlu0 %v781
    %v783 = vpop.xlane.xlu0 %782
    %v784 = vsel %vm195, %v780, 0.0
    %785 = vadd.xlane.f32.xlu0 %v784
    %v786 = vpop.xlane.xlu0 %785
    %v787 = vmul.f32 %v783, %v633
    %v788 = vmul.f32 %v786, %v633
    %v789 = vadd.f32 %v787, 1e-05
    %v790 = vadd.f32 %v788, 1e-05
    %v791 = vrsqrt.pop %v789
    %v792 = vmul.f32 %v791, %v789
    %v793 = vmul.f32 %v792, %v791
    %v794 = vmul.f32 0.5, %v793
    %v795 = vsub.f32 1.5, %v794
    %v796 = vmul.f32 %v791, %v795
    %vm797 = vweird.f32 %v789
    %vm798 = vweird.f32 %v791
    %vm799 = vmor %vm797, %vm798
    %v800 = vsel %vm799, %v791, %v796
    %v801 = vrsqrt.pop %v790
    %v802 = vmul.f32 %v801, %v790
    %v803 = vmul.f32 %v802, %v801
    %v804 = vmul.f32 0.5, %v803
    %v805 = vsub.f32 1.5, %v804
    %v806 = vmul.f32 %v801, %v805
    %vm807 = vweird.f32 %v790
    %vm808 = vweird.f32 %v801
    %vm809 = vmor %vm807, %vm808
    %v810 = vsel %vm809, %v801, %v806
    %v811 = vmul.f32 %v777, %v800
    %v812 = vmul.f32 %v778, %v810
    %v813 = vperm.slane %v152, 0
    %v814 = vmul.f32 %v811, %v813
    %v815 = vmul.f32 %v812, %v813
    %v816 = vperm.slane %v153, 0
    %v817 = vadd.f32 %v814, %v816
    %v818 = vadd.f32 %v815, %v816
    %819 = vst.msk [vmem:[#allocation14] sm:$0xff] %vm195, %v817
    %820 = vst.msk [vmem:[#allocation14 + $0x8] sm:$0xff] %vm195, %v818
    // Predicated region
    $region70: #{tpu_custom_call.1} parent=1 // pred_check
      _
    $region71: #{tpu_custom_call.1} parent=1 // pred_check_branch
      %822 = sbr.rel (0) target = $region73
    $region72: #{tpu_custom_call.1} parent=1 // pred_region
      %824 = vsyncadd [#allocation4], 0
      %s825 = sshll.u32 [#allocation14], 4
      %s826 = int_to_ptr.vmem [resolvable:$true] %s825
      %s827 = sshll.u32 %s10, 4
      %s828 = int_to_ptr.hbm [resolvable:$true] %s827
      %833 = dma.vmem_to_hbm [thread:$0]  %s826, 256, %s828, [#allocation4], 128, 128, 8
    $region73: #{tpu_custom_call.1} parent=1 // pred_fallthru
      _
    // Predicated region
    $region74: #{tpu_custom_call.1} parent=1 // pred_check
      _
    $region75: #{tpu_custom_call.1} parent=1 // pred_check_branch
      %835 = sbr.rel (0) target = $region77
    $region76: #{tpu_custom_call.1} parent=1 // pred_region
      %837 = dma.done [#allocation4], 256
    $region77: #{tpu_custom_call.1} parent=1 // pred_fallthru
      _
    %838 = vsyncpa [#allocation3], 1
    %839 = vsyncpa [#allocation6], 1
    %840 = vsyncpa [#allocation9], 1
    %841 = vsyncpa [#allocation12], 1
    %842 = vsyncpa [#allocation4], 1

</llo_original>
